<compile_context>
chip_gen: v7x
topology: tpu7x:2x2x1
jax: 0.10.0
libtpu: 0.0.40
codegen_flags: <defaults>
</compile_context>

<pallas_src>
import functools

import numpy as np
import jax
import jax.numpy as jnp
from jax.experimental import pallas as pl
from jax.experimental.pallas import tpu as pltpu


def _t5_self_attn_kernel(x_ref, lnw_ref, wq_ref, wk_ref, wv_ref, wo_ref,
                         o_ref,
                         normed_ref, acc_ref, kbuf_ref, vbuf_ref, ctx_ref,
                         *, eps, compute_dtype, d_kv, group_size, q_tile,
                         weights_resident, fast_softmax_exp):
    # Grid: (batch b, head-group g, query-tile qi).
    g = pl.program_id(1)
    qi = pl.program_id(2)
    last_g = pl.num_programs(1) - 1
    last_qi = pl.num_programs(2) - 1

    # ---- once per batch element: T5LayerNorm + residual seed ---------------
    @pl.when((g == 0) & (qi == 0))
    def _init():
        x = x_ref[0].astype(jnp.float32)                        # (S, D)
        var = jnp.mean(x * x, axis=-1, keepdims=True)           # (S, 1)
        nrm = x * jax.lax.rsqrt(var + eps) * lnw_ref[...]       # (S, D) fp32
        normed_ref[...] = nrm.astype(compute_dtype)             # stored once
        acc_ref[...] = x                                        # residual seed

    # Static switch: resident weights are indexed by group inside the kernel;
    # otherwise the (1, D, GK) block already is this group's slab.
    widx = g if weights_resident else 0

    # ---- once per (batch, group): K/V projection over the full sequence ----
    @pl.when(qi == 0)
    def _project_kv():
        nrm_all = normed_ref[...]                               # (S, D)
        kbuf_ref[...] = jnp.dot(nrm_all, wk_ref[widx],
                                preferred_element_type=compute_dtype)
        vbuf_ref[...] = jnp.dot(nrm_all, wv_ref[widx],
                                preferred_element_type=compute_dtype)

    # ---- this query tile's Q projection (wide: all heads of the group) -----
    row0 = pl.multiple_of(qi * q_tile, q_tile)
    nrm_q = normed_ref[pl.ds(row0, q_tile), :]                  # (tq, D)
    q_t = jnp.dot(nrm_q, wq_ref[widx],
                  preferred_element_type=compute_dtype)         # (tq, G*d_kv)

    kbuf = kbuf_ref[...]                                        # (S, G*d_kv)
    vbuf = vbuf_ref[...]

    # ---- per-head attention inside the group (static unroll, G small) ------
    for hg in range(group_size):
        lo = hg * d_kv
        q_h = q_t[:, lo:lo + d_kv]                              # (tq, d_kv)
        k_h = kbuf[:, lo:lo + d_kv]                             # (S,  d_kv)
        v_h = vbuf[:, lo:lo + d_kv]                             # (S,  d_kv)
        # QK^T: contract last dims -> transposed-RHS MXU load, no XLU vxpose.
        # T5 convention: no 1/sqrt(d_kv) scaling; position_bias is all zeros.
        scores = jax.lax.dot_general(
            q_h, k_h, (((1,), (1,)), ((), ())),
            preferred_element_type=jnp.float32)                 # (tq, S) fp32

        m = jnp.max(scores, axis=-1, keepdims=True)             # (tq, 1)
        if fast_softmax_exp:
            # optional (v6e/v7x): exp in compute dtype, row-sum stays fp32
            p = jnp.exp((scores - m).astype(compute_dtype))
            l = jnp.sum(p.astype(jnp.float32), axis=-1, keepdims=True)
        else:
            p32 = jnp.exp(scores - m)                           # fp32
            l = jnp.sum(p32, axis=-1, keepdims=True)
            p = p32.astype(compute_dtype)
        ctx = jnp.dot(p, v_h, preferred_element_type=jnp.float32)  # (tq, d_kv)
        ctx = ctx / l                                           # exact, deferred
        ctx_ref[:, lo:lo + d_kv] = ctx.astype(compute_dtype)

    # ---- one wide Wo matmul per group; single accumulator RMW pass ---------
    group_out = jnp.dot(ctx_ref[...], wo_ref[widx],
                        preferred_element_type=jnp.float32)     # (tq, D)
    acc_ref[pl.ds(row0, q_tile), :] += group_out

    @pl.when((g == last_g) & (qi == last_qi))
    def _finalize():
        o_ref[0] = acc_ref[...].astype(o_ref.dtype)


def _choose_group_size(n_heads, d_kv, target_width):
    """Largest divisor of n_heads with group_size * d_kv <= target_width."""
    g = max(1, min(n_heads, target_width // max(d_kv, 1)))
    while n_heads % g != 0:
        g -= 1
    return g


def _choose_q_tile(seq_len, target):
    """Largest divisor of seq_len <= target (prefer multiples of 8)."""
    t_max = min(target, seq_len)
    for t in range(t_max, 7, -1):
        if seq_len % t == 0 and t % 8 == 0:
            return t
    for t in range(t_max, 0, -1):
        if seq_len % t == 0:
            return t
    return seq_len


def _pick_vmem_limit_bytes():
    """~85% of this generation's physical VMEM (54 MiB v7x, ~108 MiB v5e/v6e)."""
    cap = None
    try:
        cap = getattr(pltpu.get_tpu_info(), "vmem_capacity_bytes", None)
    except Exception:
        cap = None
    if not cap:
        cap = 64 * 1024 * 1024      # conservative: v7x physical VMEM
    return int(max(32 * 1024 * 1024, min(int(cap * 0.85), 112 * 1024 * 1024)))


def t5_layer_self_attention(hidden_states, ln_weight, wq, wk, wv, wo, *,
                            n_heads, d_kv, eps=1e-6, compute_dtype=None,
                            group_target_width=256, q_tile_target=256,
                            fast_softmax_exp=False,
                            materialize_position_bias=False):
    """Returns (hidden_states_out, present_key_value_state, position_bias).

    Weights use the nn.Linear convention: wq/wk/wv are (inner, D), wo is (D, inner).
    """
    B, S, D = hidden_states.shape
    inner = n_heads * d_kv
    assert wq.shape == (inner, D) and wk.shape == (inner, D)
    assert wv.shape == (inner, D) and wo.shape == (D, inner)
    if compute_dtype is None:
        compute_dtype = hidden_states.dtype   # bf16 inputs -> bf16 MXU operands
    compute_dtype = np.dtype(compute_dtype)

    G = _choose_group_size(n_heads, d_kv, group_target_width)
    n_groups = n_heads // G
    GK = G * d_kv
    q_tile = _choose_q_tile(S, q_tile_target)
    n_q_tiles = S // q_tile

    # Host-side, one-time weight re-layout (usually constant-folded by XLA):
    # every in-kernel matmul becomes a transpose-free [rows, K] @ [K, N] dot,
    # with N/K packed to G*d_kv lanes to fill the MXU.
    def group_major_in(w):                     # (inner, D) -> (n_groups, D, GK)
        return (w.reshape(n_groups, GK, D).transpose(0, 2, 1)
                 .astype(compute_dtype))

    wq_g = group_major_in(wq)
    wk_g = group_major_in(wk)
    wv_g = group_major_in(wv)
    wo_g = wo.T.reshape(n_groups, GK, D).astype(compute_dtype)   # (n_groups, GK, D)
    ln_w2d = ln_weight.reshape(1, D).astype(jnp.float32)

    # Keep all projection weights VMEM-resident across the whole grid when they
    # fit comfortably (cuts HBM weight traffic from B*H*(4*D*d_kv) to H*(4*D*d_kv)).
    weight_bytes = 4 * inner * D * compute_dtype.itemsize
    weights_resident = weight_bytes <= 16 * 1024 * 1024

    if weights_resident:
        w_in_spec = pl.BlockSpec((n_groups, D, GK), lambda b, g, qi: (0, 0, 0))
        w_out_spec = pl.BlockSpec((n_groups, GK, D), lambda b, g, qi: (0, 0, 0))
    else:
        # grid-indexed per-group slabs; deeper pipelining to hide the slab DMA
        w_in_spec = pl.BlockSpec((1, D, GK), lambda b, g, qi: (g, 0, 0),
                                 pipeline_mode=pl.Buffered(3))
        w_out_spec = pl.BlockSpec((1, GK, D), lambda b, g, qi: (g, 0, 0),
                                  pipeline_mode=pl.Buffered(3))

    kernel = functools.partial(
        _t5_self_attn_kernel, eps=eps, compute_dtype=compute_dtype,
        d_kv=d_kv, group_size=G, q_tile=q_tile,
        weights_resident=weights_resident,
        fast_softmax_exp=bool(fast_softmax_exp) and compute_dtype != np.float32)

    out = pl.pallas_call(
        kernel,
        out_shape=jax.ShapeDtypeStruct((B, S, D), hidden_states.dtype),
        grid_spec=pltpu.PrefetchScalarGridSpec(
            num_scalar_prefetch=0,
            grid=(B, n_groups, n_q_tiles),
            in_specs=[
                pl.BlockSpec((1, S, D), lambda b, g, qi: (b, 0, 0)),   # x
                pl.BlockSpec((1, D), lambda b, g, qi: (0, 0)),         # ln weight
                w_in_spec,    # Wq group slabs
                w_in_spec,    # Wk group slabs
                w_in_spec,    # Wv group slabs
                w_out_spec,   # Wo group slabs
            ],
            out_specs=pl.BlockSpec((1, S, D), lambda b, g, qi: (b, 0, 0)),
            scratch_shapes=[
                pltpu.VMEM((S, D), compute_dtype),       # normed (compute dtype)
                pltpu.VMEM((S, D), jnp.float32),         # fp32 accumulator
                pltpu.VMEM((S, GK), compute_dtype),      # K group buffer
                pltpu.VMEM((S, GK), compute_dtype),      # V group buffer
                pltpu.VMEM((q_tile, GK), compute_dtype), # per-tile context
            ],
        ),
        compiler_params=pltpu.CompilerParams(
            # batch is independent (megacore-shardable); group / q-tile axes
            # accumulate into the resident scratch, so they stay "arbitrary".
            dimension_semantics=("parallel", "arbitrary", "arbitrary"),
            vmem_limit_bytes=_pick_vmem_limit_bytes(),
        ),
    )(hidden_states, ln_w2d, wq_g, wk_g, wv_g, wo_g)

    present_key_value_state = None   # is_decoder=False / use_cache=False
    # has_relative_attention_bias=False, mask=None -> position_bias is zeros.
    position_bias = (jnp.zeros((1, n_heads, S, S), dtype=hidden_states.dtype)
                     if materialize_position_bias else None)
    return out, present_key_value_state, position_bias


def _reference(hidden_states, ln_weight, wq, wk, wv, wo, *, n_heads, d_kv, eps=1e-6):
    """Pure-JAX reference mirroring the PyTorch forward (eval mode, fp32)."""
    B, S, D = hidden_states.shape
    hp = jax.lax.Precision.HIGHEST
    xf = hidden_states.astype(jnp.float32)
    var = jnp.mean(xf * xf, axis=-1, keepdims=True)
    normed = xf * jax.lax.rsqrt(var + eps) * ln_weight.astype(jnp.float32)
    q = jnp.dot(normed, wq.T, precision=hp)
    k = jnp.dot(normed, wk.T, precision=hp)
    v = jnp.dot(normed, wv.T, precision=hp)

    def heads(t):  # (B, S, inner) -> (B, H, S, d_kv)
        return t.reshape(B, S, n_heads, d_kv).transpose(0, 2, 1, 3)

    qh, kh, vh = heads(q), heads(k), heads(v)
    scores = jnp.einsum("bhqd,bhkd->bhqk", qh, kh, precision=hp)
    attn = jax.nn.softmax(scores, axis=-1)
    ctx = jnp.einsum("bhqk,bhkd->bhqd", attn, vh, precision=hp)
    ctx = ctx.transpose(0, 2, 1, 3).reshape(B, S, n_heads * d_kv)
    out = jnp.dot(ctx, wo.T, precision=hp)
    return hidden_states + out


if __name__ == "__main__":
    # Small, forward-consistent shapes.
    B, S, D = 2, 8, 32
    n_heads, d_kv = 4, 8
    inner = n_heads * d_kv

    key = jax.random.PRNGKey(0)
    k_x, k_q, k_k, k_v, k_o = jax.random.split(key, 5)

    hidden_states = jax.random.normal(k_x, (B, S, D), dtype=jnp.float32)
    ln_weight = jnp.ones((D,), dtype=jnp.float32)               # T5LayerNorm init
    wq = jax.random.normal(k_q, (inner, D), dtype=jnp.float32) * 0.05
    wk = jax.random.normal(k_k, (inner, D), dtype=jnp.float32) * 0.05
    wv = jax.random.normal(k_v, (inner, D), dtype=jnp.float32) * 0.05
    wo = jax.random.normal(k_o, (D, inner), dtype=jnp.float32) * 0.05

    out, present_kv, position_bias = t5_layer_self_attention(
        hidden_states, ln_weight, wq, wk, wv, wo, n_heads=n_heads, d_kv=d_kv)
    out = jax.block_until_ready(out)

    ref = _reference(hidden_states, ln_weight, wq, wk, wv, wo,
                     n_heads=n_heads, d_kv=d_kv)
    assert out.shape == (B, S, D)
    max_err = float(jnp.max(jnp.abs(out - ref)))
    assert jnp.allclose(out, ref, atol=2e-3, rtol=2e-3), \
        f"max abs err {max_err}"

    print("KERNEL_OK")
</pallas_src>

<mosaic_0001>
module attributes {stable_mosaic.version = 11 : i64} {
  func.func @_t5_self_attn_kernel(%arg0: i32, %arg1: i32, %arg2: i32, %arg3: memref<1x8x32xf32, #tpu.memory_space<vmem>>, %arg4: memref<1x32xf32, #tpu.memory_space<vmem>>, %arg5: memref<1x32x32xf32, #tpu.memory_space<vmem>>, %arg6: memref<1x32x32xf32, #tpu.memory_space<vmem>>, %arg7: memref<1x32x32xf32, #tpu.memory_space<vmem>>, %arg8: memref<1x32x32xf32, #tpu.memory_space<vmem>>, %arg9: memref<1x8x32xf32, #tpu.memory_space<vmem>>, %arg10: memref<8x32xf32, #tpu.memory_space<vmem>>, %arg11: memref<8x32xf32, #tpu.memory_space<vmem>>, %arg12: memref<8x32xf32, #tpu.memory_space<vmem>>, %arg13: memref<8x32xf32, #tpu.memory_space<vmem>>, %arg14: memref<8x32xf32, #tpu.memory_space<vmem>>) attributes {dimension_semantics = [#tpu.dimension_semantics<parallel>, #tpu.dimension_semantics<arbitrary>, #tpu.dimension_semantics<arbitrary>], iteration_bounds = array<i64: 2, 1, 1>, scalar_prefetch = 0 : i64, scratch_operands = 5 : i64, tpu.core_type = #tpu.core_type<tc>, window_params = [{transform_indices = @transform_0, window_bounds = array<i64: 1, 8, 32>}, {pipeline_mode = #tpu.pipeline_mode<synchronous>, transform_indices = @transform_1, window_bounds = array<i64: 1, 32>}, {pipeline_mode = #tpu.pipeline_mode<synchronous>, transform_indices = @transform_2, window_bounds = array<i64: 1, 32, 32>}, {pipeline_mode = #tpu.pipeline_mode<synchronous>, transform_indices = @transform_3, window_bounds = array<i64: 1, 32, 32>}, {pipeline_mode = #tpu.pipeline_mode<synchronous>, transform_indices = @transform_4, window_bounds = array<i64: 1, 32, 32>}, {pipeline_mode = #tpu.pipeline_mode<synchronous>, transform_indices = @transform_5, window_bounds = array<i64: 1, 32, 32>}, {transform_indices = @transform_6, window_bounds = array<i64: 1, 8, 32>}]} {
    %c0_i32 = arith.constant 0 : i32
    %0 = arith.cmpi eq, %arg1, %c0_i32 : i32
    %c0_i32_0 = arith.constant 0 : i32
    %1 = arith.cmpi eq, %arg2, %c0_i32_0 : i32
    %2 = arith.andi %0, %1 : i1
    %3 = arith.extui %2 : i1 to i32
    %c0_i32_1 = arith.constant 0 : i32
    %4 = arith.cmpi ne, %3, %c0_i32_1 : i32
    scf.if %4 {
      %c0_41 = arith.constant 0 : index
      %c0_42 = arith.constant 0 : index
      %c0_43 = arith.constant 0 : index
      %93 = vector.load %arg3[%c0_41, %c0_42, %c0_43] : memref<1x8x32xf32, #tpu.memory_space<vmem>>, vector<1x8x32xf32>
      %94 = vector.shape_cast %93 : vector<1x8x32xf32> to vector<8x32xf32>
      %95 = arith.mulf %94, %94 : vector<8x32xf32>
      %cst_44 = arith.constant dense<0.000000e+00> : vector<8xf32>
      %96 = vector.multi_reduction <add>, %95, %cst_44 [1] : vector<8x32xf32> to vector<8xf32>
      %97 = vector.shape_cast %96 : vector<8xf32> to vector<8x1xf32>
      %cst_45 = arith.constant 3.200000e+01 : f32
      %98 = vector.broadcast %cst_45 : f32 to vector<8x1xf32>
      %99 = arith.divf %97, %98 : vector<8x1xf32>
      %cst_46 = arith.constant 9.99999997E-7 : f32
      %100 = vector.broadcast %cst_46 : f32 to vector<8x1xf32>
      %101 = arith.addf %99, %100 : vector<8x1xf32>
      %102 = math.rsqrt %101 : vector<8x1xf32>
      %103 = vector.broadcast %102 : vector<8x1xf32> to vector<8x32xf32>
      %104 = arith.mulf %94, %103 : vector<8x32xf32>
      %c0_47 = arith.constant 0 : index
      %c0_48 = arith.constant 0 : index
      %105 = vector.load %arg4[%c0_47, %c0_48] : memref<1x32xf32, #tpu.memory_space<vmem>>, vector<1x32xf32>
      %106 = vector.broadcast %105 : vector<1x32xf32> to vector<8x32xf32>
      %107 = arith.mulf %104, %106 : vector<8x32xf32>
      %c0_49 = arith.constant 0 : index
      %c0_50 = arith.constant 0 : index
      %108 = vector.load %arg10[%c0_49, %c0_50] : memref<8x32xf32, #tpu.memory_space<vmem>>, vector<8x32xf32>
      tpu.vector_store %arg10[%c0_49, %c0_50], %107 {strides = array<i32>} : memref<8x32xf32, #tpu.memory_space<vmem>>, vector<8x32xf32>,
      %c0_51 = arith.constant 0 : index
      %c0_52 = arith.constant 0 : index
      %109 = vector.load %arg11[%c0_51, %c0_52] : memref<8x32xf32, #tpu.memory_space<vmem>>, vector<8x32xf32>
      tpu.vector_store %arg11[%c0_51, %c0_52], %94 {strides = array<i32>} : memref<8x32xf32, #tpu.memory_space<vmem>>, vector<8x32xf32>,
    } else {
    }
    %c0_i32_2 = arith.constant 0 : i32
    %5 = arith.cmpi eq, %arg2, %c0_i32_2 : i32
    %6 = arith.extui %5 : i1 to i32
    %c0_i32_3 = arith.constant 0 : i32
    %7 = arith.cmpi ne, %6, %c0_i32_3 : i32
    scf.if %7 {
      %c0_41 = arith.constant 0 : index
      %c0_42 = arith.constant 0 : index
      %93 = vector.load %arg10[%c0_41, %c0_42] : memref<8x32xf32, #tpu.memory_space<vmem>>, vector<8x32xf32>
      %94 = arith.index_cast %arg1 : i32 to index
      %c0_43 = arith.constant 0 : index
      %c0_44 = arith.constant 0 : index
      %95 = vector.load %arg6[%94, %c0_43, %c0_44] : memref<1x32x32xf32, #tpu.memory_space<vmem>>, vector<1x32x32xf32>
      %96 = vector.shape_cast %95 : vector<1x32x32xf32> to vector<32x32xf32>
      %cst_45 = arith.constant dense<0.000000e+00> : vector<8x32xf32>
      %97 = tpu.matmul %93, %96, %cst_45 {dimension_numbers = #tpu.dot_dimension_numbers<[1], [0], [0], [1], [0, 0, 1, 1], [], []>} : vector<8x32xf32>, vector<32x32xf32>, vector<8x32xf32> -> vector<8x32xf32>
      %c0_46 = arith.constant 0 : index
      %c0_47 = arith.constant 0 : index
      %98 = vector.load %arg12[%c0_46, %c0_47] : memref<8x32xf32, #tpu.memory_space<vmem>>, vector<8x32xf32>
      tpu.vector_store %arg12[%c0_46, %c0_47], %97 {strides = array<i32>} : memref<8x32xf32, #tpu.memory_space<vmem>>, vector<8x32xf32>,
      %99 = arith.index_cast %arg1 : i32 to index
      %c0_48 = arith.constant 0 : index
      %c0_49 = arith.constant 0 : index
      %100 = vector.load %arg7[%99, %c0_48, %c0_49] : memref<1x32x32xf32, #tpu.memory_space<vmem>>, vector<1x32x32xf32>
      %101 = vector.shape_cast %100 : vector<1x32x32xf32> to vector<32x32xf32>
      %cst_50 = arith.constant dense<0.000000e+00> : vector<8x32xf32>
      %102 = tpu.matmul %93, %101, %cst_50 {dimension_numbers = #tpu.dot_dimension_numbers<[1], [0], [0], [1], [0, 0, 1, 1], [], []>} : vector<8x32xf32>, vector<32x32xf32>, vector<8x32xf32> -> vector<8x32xf32>
      %c0_51 = arith.constant 0 : index
      %c0_52 = arith.constant 0 : index
      %103 = vector.load %arg13[%c0_51, %c0_52] : memref<8x32xf32, #tpu.memory_space<vmem>>, vector<8x32xf32>
      tpu.vector_store %arg13[%c0_51, %c0_52], %102 {strides = array<i32>} : memref<8x32xf32, #tpu.memory_space<vmem>>, vector<8x32xf32>,
    } else {
    }
    %c8_i32 = arith.constant 8 : i32
    %8 = arith.muli %arg2, %c8_i32 : i32
    %9 = tpu.assume_multiple %8, 8 : i32
    %10 = arith.index_cast %9 : i32 to index
    %c0 = arith.constant 0 : index
    %11 = vector.load %arg10[%10, %c0] : memref<8x32xf32, #tpu.memory_space<vmem>>, vector<8x32xf32>
    %12 = arith.index_cast %arg1 : i32 to index
    %c0_4 = arith.constant 0 : index
    %c0_5 = arith.constant 0 : index
    %13 = vector.load %arg5[%12, %c0_4, %c0_5] : memref<1x32x32xf32, #tpu.memory_space<vmem>>, vector<1x32x32xf32>
    %14 = vector.shape_cast %13 : vector<1x32x32xf32> to vector<32x32xf32>
    %cst = arith.constant dense<0.000000e+00> : vector<8x32xf32>
    %15 = tpu.matmul %11, %14, %cst {dimension_numbers = #tpu.dot_dimension_numbers<[1], [0], [0], [1], [0, 0, 1, 1], [], []>} : vector<8x32xf32>, vector<32x32xf32>, vector<8x32xf32> -> vector<8x32xf32>
    %c0_6 = arith.constant 0 : index
    %c0_7 = arith.constant 0 : index
    %16 = vector.load %arg12[%c0_6, %c0_7] : memref<8x32xf32, #tpu.memory_space<vmem>>, vector<8x32xf32>
    %c0_8 = arith.constant 0 : index
    %c0_9 = arith.constant 0 : index
    %17 = vector.load %arg13[%c0_8, %c0_9] : memref<8x32xf32, #tpu.memory_space<vmem>>, vector<8x32xf32>
    %18 = vector.extract_strided_slice %15 {offsets = [0, 0], sizes = [8, 8], strides = [1, 1]} : vector<8x32xf32> to vector<8x8xf32>
    %19 = vector.extract_strided_slice %16 {offsets = [0, 0], sizes = [8, 8], strides = [1, 1]} : vector<8x32xf32> to vector<8x8xf32>
    %20 = vector.extract_strided_slice %17 {offsets = [0, 0], sizes = [8, 8], strides = [1, 1]} : vector<8x32xf32> to vector<8x8xf32>
    %cst_10 = arith.constant dense<0.000000e+00> : vector<8x8xf32>
    %21 = tpu.matmul %18, %19, %cst_10 {dimension_numbers = #tpu.dot_dimension_numbers<[1], [1], [0], [0], [0, 0, 1, 0], [], []>} : vector<8x8xf32>, vector<8x8xf32>, vector<8x8xf32> -> vector<8x8xf32>
    %cst_11 = arith.constant dense<0xFF800000> : vector<8xf32>
    %22 = vector.multi_reduction <maximumf>, %21, %cst_11 [1] : vector<8x8xf32> to vector<8xf32>
    %23 = vector.shape_cast %22 : vector<8xf32> to vector<8x1xf32>
    %24 = vector.broadcast %23 : vector<8x1xf32> to vector<8x8xf32>
    %25 = arith.subf %21, %24 : vector<8x8xf32>
    %26 = math.exp %25 : vector<8x8xf32>
    %cst_12 = arith.constant dense<0.000000e+00> : vector<8xf32>
    %27 = vector.multi_reduction <add>, %26, %cst_12 [1] : vector<8x8xf32> to vector<8xf32>
    %28 = vector.shape_cast %27 : vector<8xf32> to vector<8x1xf32>
    %cst_13 = arith.constant dense<0.000000e+00> : vector<8x8xf32>
    %29 = tpu.matmul %26, %20, %cst_13 {dimension_numbers = #tpu.dot_dimension_numbers<[1], [0], [0], [1], [0, 0, 1, 1], [], []>} : vector<8x8xf32>, vector<8x8xf32>, vector<8x8xf32> -> vector<8x8xf32>
    %30 = vector.broadcast %28 : vector<8x1xf32> to vector<8x8xf32>
    %31 = arith.divf %29, %30 : vector<8x8xf32>
    %c0_14 = arith.constant 0 : index
    %c0_15 = arith.constant 0 : index
    %32 = vector.load %arg14[%c0_14, %c0_15] : memref<8x32xf32, #tpu.memory_space<vmem>>, vector<8x8xf32>
    tpu.vector_store %arg14[%c0_14, %c0_15], %31 {strides = array<i32>} : memref<8x32xf32, #tpu.memory_space<vmem>>, vector<8x8xf32>,
    %33 = vector.extract_strided_slice %15 {offsets = [0, 8], sizes = [8, 8], strides = [1, 1]} : vector<8x32xf32> to vector<8x8xf32>
    %34 = vector.extract_strided_slice %16 {offsets = [0, 8], sizes = [8, 8], strides = [1, 1]} : vector<8x32xf32> to vector<8x8xf32>
    %35 = vector.extract_strided_slice %17 {offsets = [0, 8], sizes = [8, 8], strides = [1, 1]} : vector<8x32xf32> to vector<8x8xf32>
    %cst_16 = arith.constant dense<0.000000e+00> : vector<8x8xf32>
    %36 = tpu.matmul %33, %34, %cst_16 {dimension_numbers = #tpu.dot_dimension_numbers<[1], [1], [0], [0], [0, 0, 1, 0], [], []>} : vector<8x8xf32>, vector<8x8xf32>, vector<8x8xf32> -> vector<8x8xf32>
    %cst_17 = arith.constant dense<0xFF800000> : vector<8xf32>
    %37 = vector.multi_reduction <maximumf>, %36, %cst_17 [1] : vector<8x8xf32> to vector<8xf32>
    %38 = vector.shape_cast %37 : vector<8xf32> to vector<8x1xf32>
    %39 = vector.broadcast %38 : vector<8x1xf32> to vector<8x8xf32>
    %40 = arith.subf %36, %39 : vector<8x8xf32>
    %41 = math.exp %40 : vector<8x8xf32>
    %cst_18 = arith.constant dense<0.000000e+00> : vector<8xf32>
    %42 = vector.multi_reduction <add>, %41, %cst_18 [1] : vector<8x8xf32> to vector<8xf32>
    %43 = vector.shape_cast %42 : vector<8xf32> to vector<8x1xf32>
    %cst_19 = arith.constant dense<0.000000e+00> : vector<8x8xf32>
    %44 = tpu.matmul %41, %35, %cst_19 {dimension_numbers = #tpu.dot_dimension_numbers<[1], [0], [0], [1], [0, 0, 1, 1], [], []>} : vector<8x8xf32>, vector<8x8xf32>, vector<8x8xf32> -> vector<8x8xf32>
    %45 = vector.broadcast %43 : vector<8x1xf32> to vector<8x8xf32>
    %46 = arith.divf %44, %45 : vector<8x8xf32>
    %c0_20 = arith.constant 0 : index
    %c8 = arith.constant 8 : index
    %47 = vector.load %arg14[%c0_20, %c8] : memref<8x32xf32, #tpu.memory_space<vmem>>, vector<8x8xf32>
    tpu.vector_store %arg14[%c0_20, %c8], %46 {strides = array<i32>} : memref<8x32xf32, #tpu.memory_space<vmem>>, vector<8x8xf32>,
    %48 = vector.extract_strided_slice %15 {offsets = [0, 16], sizes = [8, 8], strides = [1, 1]} : vector<8x32xf32> to vector<8x8xf32>
    %49 = vector.extract_strided_slice %16 {offsets = [0, 16], sizes = [8, 8], strides = [1, 1]} : vector<8x32xf32> to vector<8x8xf32>
    %50 = vector.extract_strided_slice %17 {offsets = [0, 16], sizes = [8, 8], strides = [1, 1]} : vector<8x32xf32> to vector<8x8xf32>
    %cst_21 = arith.constant dense<0.000000e+00> : vector<8x8xf32>
    %51 = tpu.matmul %48, %49, %cst_21 {dimension_numbers = #tpu.dot_dimension_numbers<[1], [1], [0], [0], [0, 0, 1, 0], [], []>} : vector<8x8xf32>, vector<8x8xf32>, vector<8x8xf32> -> vector<8x8xf32>
    %cst_22 = arith.constant dense<0xFF800000> : vector<8xf32>
    %52 = vector.multi_reduction <maximumf>, %51, %cst_22 [1] : vector<8x8xf32> to vector<8xf32>
    %53 = vector.shape_cast %52 : vector<8xf32> to vector<8x1xf32>
    %54 = vector.broadcast %53 : vector<8x1xf32> to vector<8x8xf32>
    %55 = arith.subf %51, %54 : vector<8x8xf32>
    %56 = math.exp %55 : vector<8x8xf32>
    %cst_23 = arith.constant dense<0.000000e+00> : vector<8xf32>
    %57 = vector.multi_reduction <add>, %56, %cst_23 [1] : vector<8x8xf32> to vector<8xf32>
    %58 = vector.shape_cast %57 : vector<8xf32> to vector<8x1xf32>
    %cst_24 = arith.constant dense<0.000000e+00> : vector<8x8xf32>
    %59 = tpu.matmul %56, %50, %cst_24 {dimension_numbers = #tpu.dot_dimension_numbers<[1], [0], [0], [1], [0, 0, 1, 1], [], []>} : vector<8x8xf32>, vector<8x8xf32>, vector<8x8xf32> -> vector<8x8xf32>
    %60 = vector.broadcast %58 : vector<8x1xf32> to vector<8x8xf32>
    %61 = arith.divf %59, %60 : vector<8x8xf32>
    %c0_25 = arith.constant 0 : index
    %c16 = arith.constant 16 : index
    %62 = vector.load %arg14[%c0_25, %c16] : memref<8x32xf32, #tpu.memory_space<vmem>>, vector<8x8xf32>
    tpu.vector_store %arg14[%c0_25, %c16], %61 {strides = array<i32>} : memref<8x32xf32, #tpu.memory_space<vmem>>, vector<8x8xf32>,
    %63 = vector.extract_strided_slice %15 {offsets = [0, 24], sizes = [8, 8], strides = [1, 1]} : vector<8x32xf32> to vector<8x8xf32>
    %64 = vector.extract_strided_slice %16 {offsets = [0, 24], sizes = [8, 8], strides = [1, 1]} : vector<8x32xf32> to vector<8x8xf32>
    %65 = vector.extract_strided_slice %17 {offsets = [0, 24], sizes = [8, 8], strides = [1, 1]} : vector<8x32xf32> to vector<8x8xf32>
    %cst_26 = arith.constant dense<0.000000e+00> : vector<8x8xf32>
    %66 = tpu.matmul %63, %64, %cst_26 {dimension_numbers = #tpu.dot_dimension_numbers<[1], [1], [0], [0], [0, 0, 1, 0], [], []>} : vector<8x8xf32>, vector<8x8xf32>, vector<8x8xf32> -> vector<8x8xf32>
    %cst_27 = arith.constant dense<0xFF800000> : vector<8xf32>
    %67 = vector.multi_reduction <maximumf>, %66, %cst_27 [1] : vector<8x8xf32> to vector<8xf32>
    %68 = vector.shape_cast %67 : vector<8xf32> to vector<8x1xf32>
    %69 = vector.broadcast %68 : vector<8x1xf32> to vector<8x8xf32>
    %70 = arith.subf %66, %69 : vector<8x8xf32>
    %71 = math.exp %70 : vector<8x8xf32>
    %cst_28 = arith.constant dense<0.000000e+00> : vector<8xf32>
    %72 = vector.multi_reduction <add>, %71, %cst_28 [1] : vector<8x8xf32> to vector<8xf32>
    %73 = vector.shape_cast %72 : vector<8xf32> to vector<8x1xf32>
    %cst_29 = arith.constant dense<0.000000e+00> : vector<8x8xf32>
    %74 = tpu.matmul %71, %65, %cst_29 {dimension_numbers = #tpu.dot_dimension_numbers<[1], [0], [0], [1], [0, 0, 1, 1], [], []>} : vector<8x8xf32>, vector<8x8xf32>, vector<8x8xf32> -> vector<8x8xf32>
    %75 = vector.broadcast %73 : vector<8x1xf32> to vector<8x8xf32>
    %76 = arith.divf %74, %75 : vector<8x8xf32>
    %c0_30 = arith.constant 0 : index
    %c24 = arith.constant 24 : index
    %77 = vector.load %arg14[%c0_30, %c24] : memref<8x32xf32, #tpu.memory_space<vmem>>, vector<8x8xf32>
    tpu.vector_store %arg14[%c0_30, %c24], %76 {strides = array<i32>} : memref<8x32xf32, #tpu.memory_space<vmem>>, vector<8x8xf32>,
    %c0_31 = arith.constant 0 : index
    %c0_32 = arith.constant 0 : index
    %78 = vector.load %arg14[%c0_31, %c0_32] : memref<8x32xf32, #tpu.memory_space<vmem>>, vector<8x32xf32>
    %79 = arith.index_cast %arg1 : i32 to index
    %c0_33 = arith.constant 0 : index
    %c0_34 = arith.constant 0 : index
    %80 = vector.load %arg8[%79, %c0_33, %c0_34] : memref<1x32x32xf32, #tpu.memory_space<vmem>>, vector<1x32x32xf32>
    %81 = vector.shape_cast %80 : vector<1x32x32xf32> to vector<32x32xf32>
    %cst_35 = arith.constant dense<0.000000e+00> : vector<8x32xf32>
    %82 = tpu.matmul %78, %81, %cst_35 {dimension_numbers = #tpu.dot_dimension_numbers<[1], [0], [0], [1], [0, 0, 1, 1], [], []>} : vector<8x32xf32>, vector<32x32xf32>, vector<8x32xf32> -> vector<8x32xf32>
    %83 = arith.index_cast %9 : i32 to index
    %c0_36 = arith.constant 0 : index
    %84 = vector.load %arg11[%83, %c0_36] : memref<8x32xf32, #tpu.memory_space<vmem>>, vector<8x32xf32>
    %85 = arith.addf %84, %82 : vector<8x32xf32>
    %86 = arith.index_cast %9 : i32 to index
    %c0_37 = arith.constant 0 : index
    %87 = vector.load %arg11[%86, %c0_37] : memref<8x32xf32, #tpu.memory_space<vmem>>, vector<8x32xf32>
    tpu.vector_store %arg11[%86, %c0_37], %85 {strides = array<i32>} : memref<8x32xf32, #tpu.memory_space<vmem>>, vector<8x32xf32>,
    %c0_i32_38 = arith.constant 0 : i32
    %88 = arith.cmpi eq, %arg1, %c0_i32_38 : i32
    %c0_i32_39 = arith.constant 0 : i32
    %89 = arith.cmpi eq, %arg2, %c0_i32_39 : i32
    %90 = arith.andi %88, %89 : i1
    %91 = arith.extui %90 : i1 to i32
    %c0_i32_40 = arith.constant 0 : i32
    %92 = arith.cmpi ne, %91, %c0_i32_40 : i32
    scf.if %92 {
      %c0_41 = arith.constant 0 : index
      %c0_42 = arith.constant 0 : index
      %93 = vector.load %arg11[%c0_41, %c0_42] : memref<8x32xf32, #tpu.memory_space<vmem>>, vector<8x32xf32>
      %c0_43 = arith.constant 0 : index
      %c0_44 = arith.constant 0 : index
      %c0_45 = arith.constant 0 : index
      %94 = vector.load %arg9[%c0_43, %c0_44, %c0_45] : memref<1x8x32xf32, #tpu.memory_space<vmem>>, vector<1x8x32xf32>
      %95 = vector.shape_cast %94 : vector<1x8x32xf32> to vector<8x32xf32>
      %96 = vector.shape_cast %93 : vector<8x32xf32> to vector<1x8x32xf32>
      tpu.vector_store %arg9[%c0_43, %c0_44, %c0_45], %96 {strides = array<i32>} : memref<1x8x32xf32, #tpu.memory_space<vmem>>, vector<1x8x32xf32>,
    } else {
    }
    return
  }
  func.func @transform_0(%arg0: i32, %arg1: i32, %arg2: i32) -> (i32, i32, i32) {
    %c0_i32 = arith.constant 0 : i32
    %c0_i32_0 = arith.constant 0 : i32
    %c0_i32_1 = arith.constant 0 : i32
    return %arg0, %c0_i32, %c0_i32_0 : i32, i32, i32
  }
  func.func @transform_1(%arg0: i32, %arg1: i32, %arg2: i32) -> (i32, i32) {
    %c0_i32 = arith.constant 0 : i32
    %c0_i32_0 = arith.constant 0 : i32
    %c0_i32_1 = arith.constant 0 : i32
    return %c0_i32, %c0_i32_0 : i32, i32
  }
  func.func @transform_2(%arg0: i32, %arg1: i32, %arg2: i32) -> (i32, i32, i32) {
    %c0_i32 = arith.constant 0 : i32
    %c0_i32_0 = arith.constant 0 : i32
    %c0_i32_1 = arith.constant 0 : i32
    %c0_i32_2 = arith.constant 0 : i32
    return %c0_i32, %c0_i32_0, %c0_i32_1 : i32, i32, i32
  }
  func.func @transform_3(%arg0: i32, %arg1: i32, %arg2: i32) -> (i32, i32, i32) {
    %c0_i32 = arith.constant 0 : i32
    %c0_i32_0 = arith.constant 0 : i32
    %c0_i32_1 = arith.constant 0 : i32
    %c0_i32_2 = arith.constant 0 : i32
    return %c0_i32, %c0_i32_0, %c0_i32_1 : i32, i32, i32
  }
  func.func @transform_4(%arg0: i32, %arg1: i32, %arg2: i32) -> (i32, i32, i32) {
    %c0_i32 = arith.constant 0 : i32
    %c0_i32_0 = arith.constant 0 : i32
    %c0_i32_1 = arith.constant 0 : i32
    %c0_i32_2 = arith.constant 0 : i32
    return %c0_i32, %c0_i32_0, %c0_i32_1 : i32, i32, i32
  }
  func.func @transform_5(%arg0: i32, %arg1: i32, %arg2: i32) -> (i32, i32, i32) {
    %c0_i32 = arith.constant 0 : i32
    %c0_i32_0 = arith.constant 0 : i32
    %c0_i32_1 = arith.constant 0 : i32
    %c0_i32_2 = arith.constant 0 : i32
    return %c0_i32, %c0_i32_0, %c0_i32_1 : i32, i32, i32
  }
  func.func @transform_6(%arg0: i32, %arg1: i32, %arg2: i32) -> (i32, i32, i32) {
    %c0_i32 = arith.constant 0 : i32
    %c0_i32_0 = arith.constant 0 : i32
    %c0_i32_1 = arith.constant 0 : i32
    return %arg0, %c0_i32, %c0_i32_0 : i32, i32, i32
  }
}

</mosaic_0001>

<llo_original>
// kernel: tpu_custom_call.1
$region0: #{tpu_custom_call.1}
  #allocation0 [shape = 'u32[]', space=smem, size = 0x4, offset = 0x4, fixed_abs, tag = 'smem constant byte address 0x4 - core index']
  #allocation1 [shape = 'u32[144,128]{1,0:T(1,128)}', space=vmem, size = 0x12000, scoped, tag = 'internal scratch']
  #allocation2 [shape = 'f32[8,32]{1,0:T(8,128)}', space=vmem, size = 0x1000, scoped, tag = 'scratch operand']
  #allocation3 [shape = 'f32[8,32]{1,0:T(8,128)}', space=vmem, size = 0x1000, scoped, tag = 'scratch operand']
  #allocation4 [shape = 'f32[8,32]{1,0:T(8,128)}', space=vmem, size = 0x1000, scoped, tag = 'scratch operand']
  #allocation5 [shape = 'f32[8,32]{1,0:T(8,128)}', space=vmem, size = 0x1000, scoped, tag = 'scratch operand']
  #allocation6 [shape = 'f32[8,32]{1,0:T(8,128)}', space=vmem, size = 0x1000, scoped, tag = 'scratch operand']
  %s0 = inlined_call_operand.hbm [shape: f32[2,8,32], index: 0, kind: input, shape index: {}]
  %s1 = inlined_call_operand.vmem [shape: f32[1,32], index: 1, kind: input, shape index: {}]
  %s2 = inlined_call_operand.hbm [shape: f32[1,32,32], index: 2, kind: input, shape index: {}]
  %s3 = inlined_call_operand.hbm [shape: f32[1,32,32], index: 3, kind: input, shape index: {}]
  %s4 = inlined_call_operand.hbm [shape: f32[1,32,32], index: 4, kind: input, shape index: {}]
  %s5 = inlined_call_operand.hbm [shape: f32[1,32,32], index: 5, kind: input, shape index: {}]
  %s6 = inlined_call_operand.hbm [shape: f32[2,8,32], index: 6, kind: output, shape index: {}]
  %s7 = sld [smem:[#allocation0]]
  $region89: #{tpu_custom_call.1} parent=0
    _
  %s9 = ssub.s32 1, %s7
  %s10 = scalar_select 0, %s9, %s7
  $region1: #{tpu_custom_call.1} parent=0
    #allocation7 [shape = 'u8[8192]{0}', space=vmem, size = 0x2000, scoped, tag = 'input window, operand 0']
    #allocation8 [shape = 's32[2]{0}', space=sflag, size = 0x8, scoped, tag = 'scoped memory for tpu_custom_call.1']
    #allocation9 [shape = 's32[2]{0}', space=sflag, size = 0x8, scoped, tag = 'scoped memory for tpu_custom_call.1']
    #allocation10 [shape = 'u8[16384]{0}', space=vmem, size = 0x4000, scoped, tag = 'input window, operand 2, single buffered']
    #allocation11 [shape = 's32[1]{0}', space=sflag, size = 0x4, scoped, tag = 'scoped memory for tpu_custom_call.1']
    #allocation12 [shape = 'u8[16384]{0}', space=vmem, size = 0x4000, scoped, tag = 'input window, operand 3, single buffered']
    #allocation13 [shape = 'u8[16384]{0}', space=vmem, size = 0x4000, scoped, tag = 'input window, operand 4, single buffered']
    #allocation14 [shape = 's32[1]{0}', space=sflag, size = 0x4, scoped, tag = 'scoped memory for tpu_custom_call.1']
    #allocation15 [shape = 'u8[16384]{0}', space=vmem, size = 0x4000, scoped, tag = 'input window, operand 5, single buffered']
    #allocation16 [shape = 'u8[8192]{0}', space=vmem, size = 0x2000, scoped, tag = 'output window, operand 0']
    %11 = vsyncpa [#allocation8], 0
    %s12 = scalar_lea.sflag [#allocation8], 1
    %13 = vsyncpa %s12, 0
    %14 = vsyncpa [#allocation11], 0
    %15 = vsyncpa [#allocation14], 0
    %16 = vsyncpa [#allocation9], 0
    %s17 = scalar_lea.sflag [#allocation9], 1
    %18 = vsyncpa %s17, 0
    loop: start=0, step=1, limit=4
    $region2: #{tpu_custom_call.1} parent=1 // loop_pre_header
      _
    $region3: #{tpu_custom_call.1} parent=1 // loop_header
      %s20 = sphi 0, %s24
      %p21 = scmp.ge.s32.totalorder %s20, 4
      %s27 = sphi 0, %s46
      %s28 = sphi 0, %s42
      %s29 = sphi 0, %s38
      %s30 = sphi 0, %s27
      %s31 = sphi 0, %s28
      %s32 = sphi 0, %s29
      %s33 = sphi 0, %s30
      %s34 = sphi 0, %s31
      %s35 = sphi 0, %s32
      %s49 = sphi 0, %s51
      %s52 = sphi 0, %s49
      %s53 = sphi 0, %s52
      %s69 = sphi 0, %s53
      %s73 = sphi 0, %s73
      %s75 = sphi 0, %s73
      %s76 = sphi 0, %s75
      %s90 = sphi 0, %s76
      %s94 = sphi 0, %s94
      %s96 = sphi 0, %s94
      %s97 = sphi 0, %s96
      %s111 = sphi 0, %s97
      %s115 = sphi 0, %s115
      %s117 = sphi 0, %s115
      %s118 = sphi 0, %s117
      %s132 = sphi 0, %s118
      %s136 = sphi 0, %s136
      %s138 = sphi 0, %s136
      %s139 = sphi 0, %s138
      %s153 = sphi 0, %s139
      %s157 = sphi 0, %s157
      %s159 = sphi 0, %s157
      %s160 = sphi 0, %s159
      %s174 = sphi 0, %s160
      %s180 = sphi 0, %s182
      %s183 = sphi 0, %s180
      %s184 = sphi 0, %s183
      %s200 = sphi 0, %s184
    $region4: #{tpu_custom_call.1} parent=1 // loop_header_branch
      %23 = sbr.rel (%p21) target = $region8
    $region5: #{tpu_custom_call.1} parent=1 // loop_body
      %s25 = ssub.s32 %s20, 1
      %s26 = ssub.s32 %s20, 2
      %s36 = sadd.s32 1, %s29
      %p37 = scmp.ge.s32.totalorder %s36, 1
      %s38 = scalar_select %p37, 0, %s36
      %s39 = sadd.s32 1, %s28
      %s40 = scalar_select %p37, %s39, %s28
      %p41 = scmp.ge.s32.totalorder %s40, 1
      %s42 = scalar_select %p41, 0, %s40
      %s43 = sadd.s32 1, %s27
      %s44 = scalar_select %p41, %s43, %s27
      %p45 = scmp.ge.s32.totalorder %s44, 2
      %s46 = scalar_select %p45, 0, %s44
      %s47 = ssub.s32 %s27, %s46
      %p48 = scmp.eq.s32.totalorder %s47, 0
      %s50 = sadd.s32 %s49, 1
      %s51 = scalar_select %p48, %s49, %s50
      %p54 = pneg %p48
      %p55 = scmp.eq.s32.totalorder %s20, 1
      %p56 = por %p54, %p55
      %p57 = scmp.ne.s32.totalorder %s49, %s52
      %p58 = scmp.eq.s32.totalorder %s20, 0
      %p59 = por %p57, %p58
      %p60 = scmp.ne.s32.totalorder %s49, %s52
      %p61 = scmp.eq.s32.totalorder %s25, 1
      %p62 = por %p60, %p61
      %p63 = scmp.ne.s32.totalorder %s52, %s53
      %p64 = scmp.eq.s32.totalorder %s25, 0
      %p65 = por %p63, %p64
      %p66 = scmp.ne.s32.totalorder %s52, %s53
      %p67 = scmp.eq.s32.totalorder %s26, 1
      %p68 = por %p66, %p67
      %p70 = scmp.ne.s32.totalorder %s53, %s69
      %p71 = scmp.eq.s32.totalorder %s26, 0
      %p72 = por %p70, %p71
      %s74 = sadd.s32 %s73, 1
      %p77 = scmp.eq.s32.totalorder %s20, 1
      %p78 = scmp.ne.s32.totalorder %s73, %s75
      %p79 = scmp.eq.s32.totalorder %s20, 0
      %p80 = por %p78, %p79
      %p81 = scmp.ne.s32.totalorder %s73, %s75
      %p82 = scmp.eq.s32.totalorder %s25, 1
      %p83 = por %p81, %p82
      %p84 = scmp.ne.s32.totalorder %s75, %s76
      %p85 = scmp.eq.s32.totalorder %s25, 0
      %p86 = por %p84, %p85
      %p87 = scmp.ne.s32.totalorder %s75, %s76
      %p88 = scmp.eq.s32.totalorder %s26, 1
      %p89 = por %p87, %p88
      %p91 = scmp.ne.s32.totalorder %s76, %s90
      %p92 = scmp.eq.s32.totalorder %s26, 0
      %p93 = por %p91, %p92
      %s95 = sadd.s32 %s94, 1
      %p98 = scmp.eq.s32.totalorder %s20, 1
      %p99 = scmp.ne.s32.totalorder %s94, %s96
      %p100 = scmp.eq.s32.totalorder %s20, 0
      %p101 = por %p99, %p100
      %p102 = scmp.ne.s32.totalorder %s94, %s96
      %p103 = scmp.eq.s32.totalorder %s25, 1
      %p104 = por %p102, %p103
      %p105 = scmp.ne.s32.totalorder %s96, %s97
      %p106 = scmp.eq.s32.totalorder %s25, 0
      %p107 = por %p105, %p106
      %p108 = scmp.ne.s32.totalorder %s96, %s97
      %p109 = scmp.eq.s32.totalorder %s26, 1
      %p110 = por %p108, %p109
      %p112 = scmp.ne.s32.totalorder %s97, %s111
      %p113 = scmp.eq.s32.totalorder %s26, 0
      %p114 = por %p112, %p113
      %s116 = sadd.s32 %s115, 1
      %p119 = scmp.eq.s32.totalorder %s20, 1
      %p120 = scmp.ne.s32.totalorder %s115, %s117
      %p121 = scmp.eq.s32.totalorder %s20, 0
      %p122 = por %p120, %p121
      %p123 = scmp.ne.s32.totalorder %s115, %s117
      %p124 = scmp.eq.s32.totalorder %s25, 1
      %p125 = por %p123, %p124
      %p126 = scmp.ne.s32.totalorder %s117, %s118
      %p127 = scmp.eq.s32.totalorder %s25, 0
      %p128 = por %p126, %p127
      %p129 = scmp.ne.s32.totalorder %s117, %s118
      %p130 = scmp.eq.s32.totalorder %s26, 1
      %p131 = por %p129, %p130
      %p133 = scmp.ne.s32.totalorder %s118, %s132
      %p134 = scmp.eq.s32.totalorder %s26, 0
      %p135 = por %p133, %p134
      %s137 = sadd.s32 %s136, 1
      %p140 = scmp.eq.s32.totalorder %s20, 1
      %p141 = scmp.ne.s32.totalorder %s136, %s138
      %p142 = scmp.eq.s32.totalorder %s20, 0
      %p143 = por %p141, %p142
      %p144 = scmp.ne.s32.totalorder %s136, %s138
      %p145 = scmp.eq.s32.totalorder %s25, 1
      %p146 = por %p144, %p145
      %p147 = scmp.ne.s32.totalorder %s138, %s139
      %p148 = scmp.eq.s32.totalorder %s25, 0
      %p149 = por %p147, %p148
      %p150 = scmp.ne.s32.totalorder %s138, %s139
      %p151 = scmp.eq.s32.totalorder %s26, 1
      %p152 = por %p150, %p151
      %p154 = scmp.ne.s32.totalorder %s139, %s153
      %p155 = scmp.eq.s32.totalorder %s26, 0
      %p156 = por %p154, %p155
      %s158 = sadd.s32 %s157, 1
      %p161 = scmp.eq.s32.totalorder %s20, 1
      %p162 = scmp.ne.s32.totalorder %s157, %s159
      %p163 = scmp.eq.s32.totalorder %s20, 0
      %p164 = por %p162, %p163
      %p165 = scmp.ne.s32.totalorder %s157, %s159
      %p166 = scmp.eq.s32.totalorder %s25, 1
      %p167 = por %p165, %p166
      %p168 = scmp.ne.s32.totalorder %s159, %s160
      %p169 = scmp.eq.s32.totalorder %s25, 0
      %p170 = por %p168, %p169
      %p171 = scmp.ne.s32.totalorder %s159, %s160
      %p172 = scmp.eq.s32.totalorder %s26, 1
      %p173 = por %p171, %p172
      %p175 = scmp.ne.s32.totalorder %s160, %s174
      %p176 = scmp.eq.s32.totalorder %s26, 0
      %p177 = por %p175, %p176
      %s178 = ssub.s32 %s27, %s46
      %p179 = scmp.eq.s32.totalorder %s178, 0
      %s181 = sadd.s32 %s180, 1
      %s182 = scalar_select %p179, %s180, %s181
      %p185 = pneg %p179
      %p186 = scmp.eq.s32.totalorder %s20, 1
      %p187 = por %p185, %p186
      %p188 = scmp.ne.s32.totalorder %s180, %s183
      %p189 = scmp.eq.s32.totalorder %s20, 0
      %p190 = por %p188, %p189
      %p191 = scmp.ne.s32.totalorder %s180, %s183
      %p192 = scmp.eq.s32.totalorder %s25, 1
      %p193 = por %p191, %p192
      %p194 = scmp.ne.s32.totalorder %s183, %s184
      %p195 = scmp.eq.s32.totalorder %s25, 0
      %p196 = por %p194, %p195
      %p197 = scmp.ne.s32.totalorder %s183, %s184
      %p198 = scmp.eq.s32.totalorder %s26, 1
      %p199 = por %p197, %p198
      %p201 = scmp.ne.s32.totalorder %s184, %s200
      %p202 = scmp.eq.s32.totalorder %s26, 0
      %p203 = por %p201, %p202
      %p204 = scmp.le.s32.totalorder 1, %s20
      %p205 = scmp.lt.s32.totalorder %s20, 3
      %p206 = pnand %p204, %p205
      %p207 = pneg %p206
      // Predicated region
      $region9: #{tpu_custom_call.1} parent=5 // pred_check
        _
      $region10: #{tpu_custom_call.1} parent=5 // pred_check_branch
        %209 = sbr.rel (%p206) target = $region12
      $region11: #{tpu_custom_call.1} parent=5 // pred_region
        %s210 = ssub.s32 %s20, 1
        // Predicated region
        $region13: #{tpu_custom_call.1} parent=11 // pred_check
          %p211 = pneg %p86
        $region14: #{tpu_custom_call.1} parent=11 // pred_check_branch
          %213 = sbr.rel (%p211) target = $region16
        $region15: #{tpu_custom_call.1} parent=11 // pred_region
          _
        $region16: #{tpu_custom_call.1} parent=11 // pred_fallthru
          _
        // Predicated region
        $region17: #{tpu_custom_call.1} parent=11 // pred_check
          %p214 = pneg %p107
        $region18: #{tpu_custom_call.1} parent=11 // pred_check_branch
          %216 = sbr.rel (%p214) target = $region20
        $region19: #{tpu_custom_call.1} parent=11 // pred_region
          %s218 = ssub.s32 512, 512
          %219 = vsyncadd [#allocation11], %s218
          %s220 = sshll.u32 [#allocation10], 4
          %s221 = int_to_ptr.vmem [resolvable:$true] %s220
          %226 = dma.hbm_to_vmem [thread:$0]  %s2, 512, %s221, [#allocation11], 128, 128, 8
        $region20: #{tpu_custom_call.1} parent=11 // pred_fallthru
          _
        // Predicated region
        $region21: #{tpu_custom_call.1} parent=11 // pred_check
          %p227 = pneg %p128
        $region22: #{tpu_custom_call.1} parent=11 // pred_check_branch
          %229 = sbr.rel (%p227) target = $region24
        $region23: #{tpu_custom_call.1} parent=11 // pred_region
          %s231 = ssub.s32 512, 512
          %232 = vsyncadd [#allocation11], %s231
          %s233 = sshll.u32 [#allocation12], 4
          %s234 = int_to_ptr.vmem [resolvable:$true] %s233
          %239 = dma.hbm_to_vmem [thread:$0]  %s3, 512, %s234, [#allocation11], 128, 128, 8
        $region24: #{tpu_custom_call.1} parent=11 // pred_fallthru
          _
        // Predicated region
        $region25: #{tpu_custom_call.1} parent=11 // pred_check
          %p240 = pneg %p149
        $region26: #{tpu_custom_call.1} parent=11 // pred_check_branch
          %242 = sbr.rel (%p240) target = $region28
        $region27: #{tpu_custom_call.1} parent=11 // pred_region
          %s244 = ssub.s32 512, 512
          %245 = vsyncadd [#allocation14], %s244
          %s246 = sshll.u32 [#allocation13], 4
          %s247 = int_to_ptr.vmem [resolvable:$true] %s246
          %252 = dma.hbm_to_vmem [thread:$0]  %s4, 512, %s247, [#allocation14], 128, 128, 8
        $region28: #{tpu_custom_call.1} parent=11 // pred_fallthru
          _
        // Predicated region
        $region29: #{tpu_custom_call.1} parent=11 // pred_check
          %p253 = pneg %p170
        $region30: #{tpu_custom_call.1} parent=11 // pred_check_branch
          %255 = sbr.rel (%p253) target = $region32
        $region31: #{tpu_custom_call.1} parent=11 // pred_region
          %s257 = ssub.s32 512, 512
          %258 = vsyncadd [#allocation14], %s257
          %s259 = sshll.u32 [#allocation15], 4
          %s260 = int_to_ptr.vmem [resolvable:$true] %s259
          %265 = dma.hbm_to_vmem [thread:$0]  %s5, 512, %s260, [#allocation14], 128, 128, 8
        $region32: #{tpu_custom_call.1} parent=11 // pred_fallthru
          _
      $region12: #{tpu_custom_call.1} parent=5 // pred_fallthru
        _
      %p266 = scmp.lt.s32.totalorder %s20, 2
      // Predicated region
      $region33: #{tpu_custom_call.1} parent=5 // pred_check
        %p267 = pneg %p266
      $region34: #{tpu_custom_call.1} parent=5 // pred_check_branch
        %269 = sbr.rel (%p267) target = $region36
      $region35: #{tpu_custom_call.1} parent=5 // pred_region
        // Predicated region
        $region37: #{tpu_custom_call.1} parent=35 // pred_check
          %p270 = pneg %p59
        $region38: #{tpu_custom_call.1} parent=35 // pred_check_branch
          %272 = sbr.rel (%p270) target = $region40
        $region39: #{tpu_custom_call.1} parent=35 // pred_region
          %s273 = sand.u32 %s49, 1
          %s274 = scalar_lea.sflag [#allocation8], %s273
          %s275 = sand.u32 %s49, 1
          %s276 = smul.addr %s275, 8
          %s277 = scalar_lea.vmem [#allocation7], %s276
          %s279 = ssub.s32 128, 128
          %280 = vsyncadd %s274, %s279
          %s281 = smul.addr %s27, 128
          %s282 = scalar_lea.hbm %s0, %s281
          %s284 = sshll.u32 %s277, 4
          %s285 = int_to_ptr.vmem [resolvable:$true] %s284
          %287 = dma.hbm_to_vmem [thread:$0]  %s282, 128, %s285, %s274
        $region40: #{tpu_custom_call.1} parent=35 // pred_fallthru
          _
      $region36: #{tpu_custom_call.1} parent=5 // pred_fallthru
        _
      %p288 = scmp.le.s32.totalorder 1, %s20
      %p289 = scmp.lt.s32.totalorder %s20, 3
      %p290 = pnand %p288, %p289
      %p291 = pneg %p290
      // Predicated region
      $region41: #{tpu_custom_call.1} parent=5 // pred_check
        _
      $region42: #{tpu_custom_call.1} parent=5 // pred_check_branch
        %293 = sbr.rel (%p290) target = $region44
      $region43: #{tpu_custom_call.1} parent=5 // pred_region
        %s294 = ssub.s32 %s20, 1
        %s295 = sand.u32 %s52, 1
        %s296 = scalar_lea.sflag [#allocation8], %s295
        %s297 = sand.u32 %s52, 1
        %s298 = smul.addr %s297, 8
        %s299 = scalar_lea.vmem [#allocation7], %s298
        // Predicated region
        $region45: #{tpu_custom_call.1} parent=43 // pred_check
          %p300 = pneg %p65
        $region46: #{tpu_custom_call.1} parent=43 // pred_check_branch
          %302 = sbr.rel (%p300) target = $region48
        $region47: #{tpu_custom_call.1} parent=43 // pred_region
          %303 = dma.done %s296, 128
        $region48: #{tpu_custom_call.1} parent=43 // pred_fallthru
          _
        // Predicated region
        $region49: #{tpu_custom_call.1} parent=43 // pred_check
          %p304 = pneg %p107
        $region50: #{tpu_custom_call.1} parent=43 // pred_check_branch
          %306 = sbr.rel (%p304) target = $region52
        $region51: #{tpu_custom_call.1} parent=43 // pred_region
          %307 = dma.done [#allocation11], 512
        $region52: #{tpu_custom_call.1} parent=43 // pred_fallthru
          _
        // Predicated region
        $region53: #{tpu_custom_call.1} parent=43 // pred_check
          %p308 = pneg %p128
        $region54: #{tpu_custom_call.1} parent=43 // pred_check_branch
          %310 = sbr.rel (%p308) target = $region56
        $region55: #{tpu_custom_call.1} parent=43 // pred_region
          %311 = dma.done [#allocation11], 512
        $region56: #{tpu_custom_call.1} parent=43 // pred_fallthru
          _
        // Predicated region
        $region57: #{tpu_custom_call.1} parent=43 // pred_check
          %p312 = pneg %p149
        $region58: #{tpu_custom_call.1} parent=43 // pred_check_branch
          %314 = sbr.rel (%p312) target = $region60
        $region59: #{tpu_custom_call.1} parent=43 // pred_region
          %315 = dma.done [#allocation14], 512
        $region60: #{tpu_custom_call.1} parent=43 // pred_fallthru
          _
        // Predicated region
        $region61: #{tpu_custom_call.1} parent=43 // pred_check
          %p316 = pneg %p170
        $region62: #{tpu_custom_call.1} parent=43 // pred_check_branch
          %318 = sbr.rel (%p316) target = $region64
        $region63: #{tpu_custom_call.1} parent=43 // pred_region
          %319 = dma.done [#allocation14], 512
        $region64: #{tpu_custom_call.1} parent=43 // pred_fallthru
          _
        %s320 = sand.u32 %s52, 1
        %s321 = scalar_lea.sflag [#allocation8], %s320
        %s322 = sand.u32 %s52, 1
        %s323 = smul.addr %s322, 8
        %s324 = scalar_lea.vmem [#allocation7], %s323
        %p325 = pneg %p65
        %p326 = pneg %p62
        %p327 = pneg %p86
        %p328 = pneg %p83
        %p329 = pneg %p107
        %p330 = pneg %p104
        %p331 = pneg %p128
        %p332 = pneg %p125
        %p333 = pneg %p149
        %p334 = pneg %p146
        %p335 = pneg %p170
        %p336 = pneg %p167
        %p337 = pneg %p196
        %p338 = pneg %p193
        %s339 = sand.u32 %s183, 1
        %s340 = scalar_lea.sflag [#allocation9], %s339
        %s341 = sand.u32 %s183, 1
        %s342 = smul.addr %s341, 8
        %s343 = scalar_lea.vmem [#allocation16], %s342
        %p344 = scmp.eq.s32.totalorder %s31, 0
        %p345 = scmp.eq.s32.totalorder %s32, 0
        %p346 = pnand %p344, %p345
        %p347 = pneg %p346
        // Predicated region
        $region65: #{tpu_custom_call.1} parent=43 // pred_check
          _
        $region66: #{tpu_custom_call.1} parent=43 // pred_check_branch
          %349 = sbr.rel (%p346) target = $region68
        $region67: #{tpu_custom_call.1} parent=43 // pred_region
          %v350 = vld [vmem:[%s299] sm:$0xff]
          %v351 = vmul.f32 %v350, %v350
          %vm352 = vcmask 261120
          %v353 = vsel %vm352, %v351, 0.0
          %354 = vadd.xlane.f32.xlu0 %v353
          %v355 = vpop.xlane.xlu0 %354
          %v356 = vrcp.pop 32.0
          %v357 = vmul.f32 %v355, %v356
          %v358 = vadd.f32 %v357, 1e-06
          %v359 = vrsqrt.pop %v358
          %v360 = vmul.f32 %v350, %v359
          %v361 = vld [vmem:[%s1] sm:$0x1]
          %v363 = vlaneseq
          %v364 = vshrl.u32 %v363, 7
          %v365 = vsub.s32 0, %v364
          %v366 = vrot.slane %v361, %v365
          %v368 = vmul.f32 %v360, %v366
          %369 = vst.msk [vmem:[#allocation2] sm:$0xff] %vm352, %v368
          %370 = vst.msk [vmem:[#allocation3] sm:$0xff] %vm352, %v350
        $region68: #{tpu_custom_call.1} parent=43 // pred_fallthru
          _
        // Predicated region
        $region69: #{tpu_custom_call.1} parent=43 // pred_check
          %p371 = pneg %p345
        $region70: #{tpu_custom_call.1} parent=43 // pred_check_branch
          %373 = sbr.rel (%p371) target = $region72
        $region71: #{tpu_custom_call.1} parent=43 // pred_region
          %v374 = vld [vmem:[#allocation2] sm:$0xff]
          %s375 = smul.u32 %s31, 32
          %s376 = scalar_lea.vmem [#allocation12], %s375
          %v377 = vld [vmem:[%s376] sm:$0xff]
          %v378 = vld [vmem:[%s376 + $0x8] sm:$0xff]
          %v379 = vld [vmem:[%s376 + $0x10] sm:$0xff]
          %v380 = vld [vmem:[%s376 + $0x18] sm:$0xff]
          %vm381 = vcmask 261120
          %v383 = vsel %vm381, %v374, 0
          %385 = vmatprep.subr.mxu0 0.0
          %386 = vmatpush1.msra.mxu0 %v377
          %387 = vmatprep.subr.mxu0 0.0
          %388 = vmatpush1.msra.mxu0 %v378
          %389 = vmatprep.subr.mxu0 0.0
          %390 = vmatpush1.msra.mxu0 %v379
          %391 = vmatprep.subr.mxu0 0.0
          %392 = vmatpush1.msra.mxu0 %v380
          %393 = vmatprep.subr.mxu0 0.0
          %394 = vmatpush1.msra.mxu0 0.0
          %395 = vmatprep.subr.mxu0 0.0
          %396 = vmatpush1.msra.mxu0 0.0
          %397 = vmatprep.subr.mxu0 0.0
          %398 = vmatpush1.msra.mxu0 0.0
          %399 = vmatprep.subr.mxu0 0.0
          %400 = vmatpush1.msra.mxu0 0.0
          %401 = vmatprep.subr.mxu0 0.0
          %402 = vmatpush1.msra.mxu0 0.0
          %403 = vmatprep.subr.mxu0 0.0
          %404 = vmatpush1.msra.mxu0 0.0
          %405 = vmatprep.subr.mxu0 0.0
          %406 = vmatpush1.msra.mxu0 0.0
          %407 = vmatprep.subr.mxu0 0.0
          %408 = vmatpush1.msra.mxu0 0.0
          %409 = vmatprep.subr.mxu0 0.0
          %410 = vmatpush1.msra.mxu0 0.0
          %411 = vmatprep.subr.mxu0 0.0
          %412 = vmatpush1.msra.mxu0 0.0
          %413 = vmatprep.subr.mxu0 0.0
          %414 = vmatpush1.msra.mxu0 0.0
          %415 = vmatprep.subr.mxu0 0.0
          %416 = vmatpush1.msra.mxu0 0.0
          %417 = vmatprep.subr.mxu0 0.0
          %418 = vmatpush1.msra.mxu0 0.0
          %419 = vmatprep.subr.mxu0 0.0
          %420 = vmatpush1.msra.mxu0 0.0
          %421 = vmatprep.subr.mxu0 0.0
          %422 = vmatpush1.msra.mxu0 0.0
          %423 = vmatprep.subr.mxu0 0.0
          %424 = vmatpush1.msra.mxu0 0.0
          %425 = vmatprep.subr.mxu0 0.0
          %426 = vmatpush1.msra.mxu0 0.0
          %427 = vmatprep.subr.mxu0 0.0
          %428 = vmatpush1.msra.mxu0 0.0
          %429 = vmatprep.subr.mxu0 0.0
          %430 = vmatpush1.msra.mxu0 0.0
          %431 = vmatprep.subr.mxu0 0.0
          %432 = vmatpush1.msra.mxu0 0.0
          %433 = vmatprep.subr.mxu0 0.0
          %434 = vmatpush1.msra.mxu0 0.0
          %435 = vmatprep.subr.mxu0 0.0
          %436 = vmatpush1.msra.mxu0 0.0
          %437 = vmatprep.subr.mxu0 0.0
          %438 = vmatpush1.msra.mxu0 0.0
          %439 = vmatprep.subr.mxu0 0.0
          %440 = vmatpush1.msra.mxu0 0.0
          %441 = vmatprep.subr.mxu0 0.0
          %442 = vmatpush1.msra.mxu0 0.0
          %443 = vmatprep.subr.mxu0 0.0
          %444 = vmatpush1.msra.mxu0 0.0
          %445 = vmatprep.subr.mxu0 0.0
          %446 = vmatpush1.msra.mxu0 0.0
          %447 = vmatprep.subr.mxu0 0.0
          %448 = vmatpush1.msra.mxu0 0.0
          %449 = vmatprep.mubr.f32.mxu0 0.0
          %450 = vmatmul.mubr.f32.gmra.mrb[0].mxu0 %v383
          %v451 = vpop.f32.mrb[0].mxu0
          %v452 = vadd.f32 0.0, %v451
          %v453 = vpop.f32.mrb[0].mxu0
          %454 = vdwg.mxu0
          %455 = vst.msk [vmem:[#allocation4] sm:$0xff] %vm381, %v452
          %s456 = scalar_lea.vmem [#allocation13], %s375
          %v457 = vld [vmem:[%s456] sm:$0xff]
          %v458 = vld [vmem:[%s456 + $0x8] sm:$0xff]
          %v459 = vld [vmem:[%s456 + $0x10] sm:$0xff]
          %v460 = vld [vmem:[%s456 + $0x18] sm:$0xff]
          %461 = vmatprep.subr.mxu0 0.0
          %462 = vmatpush1.msra.mxu0 %v457
          %463 = vmatprep.subr.mxu0 0.0
          %464 = vmatpush1.msra.mxu0 %v458
          %465 = vmatprep.subr.mxu0 0.0
          %466 = vmatpush1.msra.mxu0 %v459
          %467 = vmatprep.subr.mxu0 0.0
          %468 = vmatpush1.msra.mxu0 %v460
          %469 = vmatprep.subr.mxu0 0.0
          %470 = vmatpush1.msra.mxu0 0.0
          %471 = vmatprep.subr.mxu0 0.0
          %472 = vmatpush1.msra.mxu0 0.0
          %473 = vmatprep.subr.mxu0 0.0
          %474 = vmatpush1.msra.mxu0 0.0
          %475 = vmatprep.subr.mxu0 0.0
          %476 = vmatpush1.msra.mxu0 0.0
          %477 = vmatprep.subr.mxu0 0.0
          %478 = vmatpush1.msra.mxu0 0.0
          %479 = vmatprep.subr.mxu0 0.0
          %480 = vmatpush1.msra.mxu0 0.0
          %481 = vmatprep.subr.mxu0 0.0
          %482 = vmatpush1.msra.mxu0 0.0
          %483 = vmatprep.subr.mxu0 0.0
          %484 = vmatpush1.msra.mxu0 0.0
          %485 = vmatprep.subr.mxu0 0.0
          %486 = vmatpush1.msra.mxu0 0.0
          %487 = vmatprep.subr.mxu0 0.0
          %488 = vmatpush1.msra.mxu0 0.0
          %489 = vmatprep.subr.mxu0 0.0
          %490 = vmatpush1.msra.mxu0 0.0
          %491 = vmatprep.subr.mxu0 0.0
          %492 = vmatpush1.msra.mxu0 0.0
          %493 = vmatprep.subr.mxu0 0.0
          %494 = vmatpush1.msra.mxu0 0.0
          %495 = vmatprep.subr.mxu0 0.0
          %496 = vmatpush1.msra.mxu0 0.0
          %497 = vmatprep.subr.mxu0 0.0
          %498 = vmatpush1.msra.mxu0 0.0
          %499 = vmatprep.subr.mxu0 0.0
          %500 = vmatpush1.msra.mxu0 0.0
          %501 = vmatprep.subr.mxu0 0.0
          %502 = vmatpush1.msra.mxu0 0.0
          %503 = vmatprep.subr.mxu0 0.0
          %504 = vmatpush1.msra.mxu0 0.0
          %505 = vmatprep.subr.mxu0 0.0
          %506 = vmatpush1.msra.mxu0 0.0
          %507 = vmatprep.subr.mxu0 0.0
          %508 = vmatpush1.msra.mxu0 0.0
          %509 = vmatprep.subr.mxu0 0.0
          %510 = vmatpush1.msra.mxu0 0.0
          %511 = vmatprep.subr.mxu0 0.0
          %512 = vmatpush1.msra.mxu0 0.0
          %513 = vmatprep.subr.mxu0 0.0
          %514 = vmatpush1.msra.mxu0 0.0
          %515 = vmatprep.subr.mxu0 0.0
          %516 = vmatpush1.msra.mxu0 0.0
          %517 = vmatprep.subr.mxu0 0.0
          %518 = vmatpush1.msra.mxu0 0.0
          %519 = vmatprep.subr.mxu0 0.0
          %520 = vmatpush1.msra.mxu0 0.0
          %521 = vmatprep.subr.mxu0 0.0
          %522 = vmatpush1.msra.mxu0 0.0
          %523 = vmatprep.subr.mxu0 0.0
          %524 = vmatpush1.msra.mxu0 0.0
          %525 = vmatprep.mubr.f32.mxu0 0.0
          %526 = vmatmul.mubr.f32.gmra.mrb[0].mxu0 %v383
          %v527 = vpop.f32.mrb[0].mxu0
          %v528 = vadd.f32 0.0, %v527
          %v529 = vpop.f32.mrb[0].mxu0
          %530 = vdwg.mxu0
          %531 = vst.msk [vmem:[#allocation5] sm:$0xff] %vm381, %v528
        $region72: #{tpu_custom_call.1} parent=43 // pred_fallthru
          _
        %s532 = smul.u32 %s32, 8
        %s533 = scalar_lea.vmem [#allocation2], %s532
        %v534 = vld [vmem:[%s533] sm:$0xff]
        %s535 = smul.u32 %s31, 32
        %s536 = scalar_lea.vmem [#allocation10], %s535
        %v537 = vld [vmem:[%s536] sm:$0xff]
        %v538 = vld [vmem:[%s536 + $0x8] sm:$0xff]
        %v539 = vld [vmem:[%s536 + $0x10] sm:$0xff]
        %v540 = vld [vmem:[%s536 + $0x18] sm:$0xff]
        %vm541 = vcmask 261120
        %v543 = vsel %vm541, %v534, 0
        %545 = vmatprep.subr.mxu0 0.0
        %546 = vmatpush1.msra.mxu0 %v537
        %547 = vmatprep.subr.mxu0 0.0
        %548 = vmatpush1.msra.mxu0 %v538
        %549 = vmatprep.subr.mxu0 0.0
        %550 = vmatpush1.msra.mxu0 %v539
        %551 = vmatprep.subr.mxu0 0.0
        %552 = vmatpush1.msra.mxu0 %v540
        %553 = vmatprep.subr.mxu0 0.0
        %554 = vmatpush1.msra.mxu0 0.0
        %555 = vmatprep.subr.mxu0 0.0
        %556 = vmatpush1.msra.mxu0 0.0
        %557 = vmatprep.subr.mxu0 0.0
        %558 = vmatpush1.msra.mxu0 0.0
        %559 = vmatprep.subr.mxu0 0.0
        %560 = vmatpush1.msra.mxu0 0.0
        %561 = vmatprep.subr.mxu0 0.0
        %562 = vmatpush1.msra.mxu0 0.0
        %563 = vmatprep.subr.mxu0 0.0
        %564 = vmatpush1.msra.mxu0 0.0
        %565 = vmatprep.subr.mxu0 0.0
        %566 = vmatpush1.msra.mxu0 0.0
        %567 = vmatprep.subr.mxu0 0.0
        %568 = vmatpush1.msra.mxu0 0.0
        %569 = vmatprep.subr.mxu0 0.0
        %570 = vmatpush1.msra.mxu0 0.0
        %571 = vmatprep.subr.mxu0 0.0
        %572 = vmatpush1.msra.mxu0 0.0
        %573 = vmatprep.subr.mxu0 0.0
        %574 = vmatpush1.msra.mxu0 0.0
        %575 = vmatprep.subr.mxu0 0.0
        %576 = vmatpush1.msra.mxu0 0.0
        %577 = vmatprep.subr.mxu0 0.0
        %578 = vmatpush1.msra.mxu0 0.0
        %579 = vmatprep.subr.mxu0 0.0
        %580 = vmatpush1.msra.mxu0 0.0
        %581 = vmatprep.subr.mxu0 0.0
        %582 = vmatpush1.msra.mxu0 0.0
        %583 = vmatprep.subr.mxu0 0.0
        %584 = vmatpush1.msra.mxu0 0.0
        %585 = vmatprep.subr.mxu0 0.0
        %586 = vmatpush1.msra.mxu0 0.0
        %587 = vmatprep.subr.mxu0 0.0
        %588 = vmatpush1.msra.mxu0 0.0
        %589 = vmatprep.subr.mxu0 0.0
        %590 = vmatpush1.msra.mxu0 0.0
        %591 = vmatprep.subr.mxu0 0.0
        %592 = vmatpush1.msra.mxu0 0.0
        %593 = vmatprep.subr.mxu0 0.0
        %594 = vmatpush1.msra.mxu0 0.0
        %595 = vmatprep.subr.mxu0 0.0
        %596 = vmatpush1.msra.mxu0 0.0
        %597 = vmatprep.subr.mxu0 0.0
        %598 = vmatpush1.msra.mxu0 0.0
        %599 = vmatprep.subr.mxu0 0.0
        %600 = vmatpush1.msra.mxu0 0.0
        %601 = vmatprep.subr.mxu0 0.0
        %602 = vmatpush1.msra.mxu0 0.0
        %603 = vmatprep.subr.mxu0 0.0
        %604 = vmatpush1.msra.mxu0 0.0
        %605 = vmatprep.subr.mxu0 0.0
        %606 = vmatpush1.msra.mxu0 0.0
        %607 = vmatprep.subr.mxu0 0.0
        %608 = vmatpush1.msra.mxu0 0.0
        %609 = vmatprep.mubr.f32.mxu0 0.0
        %610 = vmatmul.mubr.f32.gmra.mrb[0].mxu0 %v543
        %v611 = vpop.f32.mrb[0].mxu0
        %v612 = vadd.f32 0.0, %v611
        %v613 = vpop.f32.mrb[0].mxu0
        %614 = vdwg.mxu0
        %v615 = vld [vmem:[#allocation4] sm:$0xff]
        %v616 = vld [vmem:[#allocation5] sm:$0xff]
        %vm617 = vcmask 64512
        %v619 = vsel %vm617, %v612, 0
        %v622 = vsel %vm617, %v615, 0
        %624 = vmatprep.subr.mxu0 0.0
        %625 = vmatpush1.xpose.msra.mxu0 %v622
        %626 = vmatprep.subr.mxu0 0.0
        %627 = vmatpush1.xpose.msra.mxu0 0.0
        %628 = vmatprep.subr.mxu0 0.0
        %629 = vmatpush1.xpose.msra.mxu0 0.0
        %630 = vmatprep.subr.mxu0 0.0
        %631 = vmatpush1.xpose.msra.mxu0 0.0
        %632 = vmatprep.subr.mxu0 0.0
        %633 = vmatpush1.xpose.msra.mxu0 0.0
        %634 = vmatprep.subr.mxu0 0.0
        %635 = vmatpush1.xpose.msra.mxu0 0.0
        %636 = vmatprep.subr.mxu0 0.0
        %637 = vmatpush1.xpose.msra.mxu0 0.0
        %638 = vmatprep.subr.mxu0 0.0
        %639 = vmatpush1.xpose.msra.mxu0 0.0
        %640 = vmatprep.subr.mxu0 0.0
        %641 = vmatpush1.xpose.msra.mxu0 0.0
        %642 = vmatprep.subr.mxu0 0.0
        %643 = vmatpush1.xpose.msra.mxu0 0.0
        %644 = vmatprep.subr.mxu0 0.0
        %645 = vmatpush1.xpose.msra.mxu0 0.0
        %646 = vmatprep.subr.mxu0 0.0
        %647 = vmatpush1.xpose.msra.mxu0 0.0
        %648 = vmatprep.subr.mxu0 0.0
        %649 = vmatpush1.xpose.msra.mxu0 0.0
        %650 = vmatprep.subr.mxu0 0.0
        %651 = vmatpush1.xpose.msra.mxu0 0.0
        %652 = vmatprep.subr.mxu0 0.0
        %653 = vmatpush1.xpose.msra.mxu0 0.0
        %654 = vmatprep.subr.mxu0 0.0
        %655 = vmatpush1.xpose.msra.mxu0 0.0
        %656 = vmatprep.subr.mxu0 0.0
        %657 = vmatpush1.xpose.msra.mxu0 0.0
        %658 = vmatprep.subr.mxu0 0.0
        %659 = vmatpush1.xpose.msra.mxu0 0.0
        %660 = vmatprep.subr.mxu0 0.0
        %661 = vmatpush1.xpose.msra.mxu0 0.0
        %662 = vmatprep.subr.mxu0 0.0
        %663 = vmatpush1.xpose.msra.mxu0 0.0
        %664 = vmatprep.subr.mxu0 0.0
        %665 = vmatpush1.xpose.msra.mxu0 0.0
        %666 = vmatprep.subr.mxu0 0.0
        %667 = vmatpush1.xpose.msra.mxu0 0.0
        %668 = vmatprep.subr.mxu0 0.0
        %669 = vmatpush1.xpose.msra.mxu0 0.0
        %670 = vmatprep.subr.mxu0 0.0
        %671 = vmatpush1.xpose.msra.mxu0 0.0
        %672 = vmatprep.subr.mxu0 0.0
        %673 = vmatpush1.xpose.msra.mxu0 0.0
        %674 = vmatprep.subr.mxu0 0.0
        %675 = vmatpush1.xpose.msra.mxu0 0.0
        %676 = vmatprep.subr.mxu0 0.0
        %677 = vmatpush1.xpose.msra.mxu0 0.0
        %678 = vmatprep.subr.mxu0 0.0
        %679 = vmatpush1.xpose.msra.mxu0 0.0
        %680 = vmatprep.subr.mxu0 0.0
        %681 = vmatpush1.xpose.msra.mxu0 0.0
        %682 = vmatprep.subr.mxu0 0.0
        %683 = vmatpush1.xpose.msra.mxu0 0.0
        %684 = vmatprep.subr.mxu0 0.0
        %685 = vmatpush1.xpose.msra.mxu0 0.0
        %686 = vmatprep.subr.mxu0 0.0
        %687 = vmatpush1.xpose.msra.mxu0 0.0
        %688 = vmatprep.mubr.f32.mxu0 0.0
        %689 = vmatmul.mubr.f32.gmra.mrb[0].mxu0 %v619
        %v690 = vpop.f32.mrb[0].mxu0
        %v691 = vadd.f32 0.0, %v690
        %v692 = vpop.f32.mrb[0].mxu0
        %693 = vdwg.mxu0
        %v694 = vsel %vm617, %v691, -inf
        %695 = vmax.xlane.f32.xlu0 %v694
        %v696 = vpop.xlane.xlu0 %695
        %v697 = vsub.f32 %v691, %v696
        %v698 = vmul.f32 %v697, 1.442695
        %v699 = vpow.pop %v698
        %v700 = vsel %vm617, %v699, 0.0
        %701 = vadd.xlane.f32.xlu0 %v700
        %v702 = vpop.xlane.xlu0 %701
        %v704 = vsel %vm617, %v699, 0
        %706 = vmatprep.subr.mxu0 0.0
        %707 = vmatpush1.msra.mxu0 %v616
        %708 = vmatprep.subr.mxu0 0.0
        %709 = vmatpush1.msra.mxu0 0.0
        %710 = vmatprep.subr.mxu0 0.0
        %711 = vmatpush1.msra.mxu0 0.0
        %712 = vmatprep.subr.mxu0 0.0
        %713 = vmatpush1.msra.mxu0 0.0
        %714 = vmatprep.subr.mxu0 0.0
        %715 = vmatpush1.msra.mxu0 0.0
        %716 = vmatprep.subr.mxu0 0.0
        %717 = vmatpush1.msra.mxu0 0.0
        %718 = vmatprep.subr.mxu0 0.0
        %719 = vmatpush1.msra.mxu0 0.0
        %720 = vmatprep.subr.mxu0 0.0
        %721 = vmatpush1.msra.mxu0 0.0
        %722 = vmatprep.subr.mxu0 0.0
        %723 = vmatpush1.msra.mxu0 0.0
        %724 = vmatprep.subr.mxu0 0.0
        %725 = vmatpush1.msra.mxu0 0.0
        %726 = vmatprep.subr.mxu0 0.0
        %727 = vmatpush1.msra.mxu0 0.0
        %728 = vmatprep.subr.mxu0 0.0
        %729 = vmatpush1.msra.mxu0 0.0
        %730 = vmatprep.subr.mxu0 0.0
        %731 = vmatpush1.msra.mxu0 0.0
        %732 = vmatprep.subr.mxu0 0.0
        %733 = vmatpush1.msra.mxu0 0.0
        %734 = vmatprep.subr.mxu0 0.0
        %735 = vmatpush1.msra.mxu0 0.0
        %736 = vmatprep.subr.mxu0 0.0
        %737 = vmatpush1.msra.mxu0 0.0
        %738 = vmatprep.subr.mxu0 0.0
        %739 = vmatpush1.msra.mxu0 0.0
        %740 = vmatprep.subr.mxu0 0.0
        %741 = vmatpush1.msra.mxu0 0.0
        %742 = vmatprep.subr.mxu0 0.0
        %743 = vmatpush1.msra.mxu0 0.0
        %744 = vmatprep.subr.mxu0 0.0
        %745 = vmatpush1.msra.mxu0 0.0
        %746 = vmatprep.subr.mxu0 0.0
        %747 = vmatpush1.msra.mxu0 0.0
        %748 = vmatprep.subr.mxu0 0.0
        %749 = vmatpush1.msra.mxu0 0.0
        %750 = vmatprep.subr.mxu0 0.0
        %751 = vmatpush1.msra.mxu0 0.0
        %752 = vmatprep.subr.mxu0 0.0
        %753 = vmatpush1.msra.mxu0 0.0
        %754 = vmatprep.subr.mxu0 0.0
        %755 = vmatpush1.msra.mxu0 0.0
        %756 = vmatprep.subr.mxu0 0.0
        %757 = vmatpush1.msra.mxu0 0.0
        %758 = vmatprep.subr.mxu0 0.0
        %759 = vmatpush1.msra.mxu0 0.0
        %760 = vmatprep.subr.mxu0 0.0
        %761 = vmatpush1.msra.mxu0 0.0
        %762 = vmatprep.subr.mxu0 0.0
        %763 = vmatpush1.msra.mxu0 0.0
        %764 = vmatprep.subr.mxu0 0.0
        %765 = vmatpush1.msra.mxu0 0.0
        %766 = vmatprep.subr.mxu0 0.0
        %767 = vmatpush1.msra.mxu0 0.0
        %768 = vmatprep.subr.mxu0 0.0
        %769 = vmatpush1.msra.mxu0 0.0
        %770 = vmatprep.mubr.f32.mxu0 0.0
        %771 = vmatmul.mubr.f32.gmra.mrb[0].mxu0 %v704
        %v772 = vpop.f32.mrb[0].mxu0
        %v773 = vadd.f32 0.0, %v772
        %v774 = vpop.f32.mrb[0].mxu0
        %775 = vdwg.mxu0
        %v776 = vrcp.pop %v702
        %v777 = vmul.f32 %v773, %v776
        %778 = vst.msk [vmem:[#allocation6] sm:$0xff] %vm617, %v777
        %779 = vrot.lane.b32.xlu0 %v612, 120
        %v780 = vpop.permute.xlu0 %779
        %781 = vrot.lane.b32.xlu0 %v615, 120
        %v782 = vpop.permute.xlu0 %781
        %v783 = vsel %vm617, %v780, 0
        %v785 = vsel %vm617, %v782, 0
        %787 = vmatprep.subr.mxu0 0.0
        %788 = vmatpush1.xpose.msra.mxu0 %v785
        %789 = vmatprep.subr.mxu0 0.0
        %790 = vmatpush1.xpose.msra.mxu0 0.0
        %791 = vmatprep.subr.mxu0 0.0
        %792 = vmatpush1.xpose.msra.mxu0 0.0
        %793 = vmatprep.subr.mxu0 0.0
        %794 = vmatpush1.xpose.msra.mxu0 0.0
        %795 = vmatprep.subr.mxu0 0.0
        %796 = vmatpush1.xpose.msra.mxu0 0.0
        %797 = vmatprep.subr.mxu0 0.0
        %798 = vmatpush1.xpose.msra.mxu0 0.0
        %799 = vmatprep.subr.mxu0 0.0
        %800 = vmatpush1.xpose.msra.mxu0 0.0
        %801 = vmatprep.subr.mxu0 0.0
        %802 = vmatpush1.xpose.msra.mxu0 0.0
        %803 = vmatprep.subr.mxu0 0.0
        %804 = vmatpush1.xpose.msra.mxu0 0.0
        %805 = vmatprep.subr.mxu0 0.0
        %806 = vmatpush1.xpose.msra.mxu0 0.0
        %807 = vmatprep.subr.mxu0 0.0
        %808 = vmatpush1.xpose.msra.mxu0 0.0
        %809 = vmatprep.subr.mxu0 0.0
        %810 = vmatpush1.xpose.msra.mxu0 0.0
        %811 = vmatprep.subr.mxu0 0.0
        %812 = vmatpush1.xpose.msra.mxu0 0.0
        %813 = vmatprep.subr.mxu0 0.0
        %814 = vmatpush1.xpose.msra.mxu0 0.0
        %815 = vmatprep.subr.mxu0 0.0
        %816 = vmatpush1.xpose.msra.mxu0 0.0
        %817 = vmatprep.subr.mxu0 0.0
        %818 = vmatpush1.xpose.msra.mxu0 0.0
        %819 = vmatprep.subr.mxu0 0.0
        %820 = vmatpush1.xpose.msra.mxu0 0.0
        %821 = vmatprep.subr.mxu0 0.0
        %822 = vmatpush1.xpose.msra.mxu0 0.0
        %823 = vmatprep.subr.mxu0 0.0
        %824 = vmatpush1.xpose.msra.mxu0 0.0
        %825 = vmatprep.subr.mxu0 0.0
        %826 = vmatpush1.xpose.msra.mxu0 0.0
        %827 = vmatprep.subr.mxu0 0.0
        %828 = vmatpush1.xpose.msra.mxu0 0.0
        %829 = vmatprep.subr.mxu0 0.0
        %830 = vmatpush1.xpose.msra.mxu0 0.0
        %831 = vmatprep.subr.mxu0 0.0
        %832 = vmatpush1.xpose.msra.mxu0 0.0
        %833 = vmatprep.subr.mxu0 0.0
        %834 = vmatpush1.xpose.msra.mxu0 0.0
        %835 = vmatprep.subr.mxu0 0.0
        %836 = vmatpush1.xpose.msra.mxu0 0.0
        %837 = vmatprep.subr.mxu0 0.0
        %838 = vmatpush1.xpose.msra.mxu0 0.0
        %839 = vmatprep.subr.mxu0 0.0
        %840 = vmatpush1.xpose.msra.mxu0 0.0
        %841 = vmatprep.subr.mxu0 0.0
        %842 = vmatpush1.xpose.msra.mxu0 0.0
        %843 = vmatprep.subr.mxu0 0.0
        %844 = vmatpush1.xpose.msra.mxu0 0.0
        %845 = vmatprep.subr.mxu0 0.0
        %846 = vmatpush1.xpose.msra.mxu0 0.0
        %847 = vmatprep.subr.mxu0 0.0
        %848 = vmatpush1.xpose.msra.mxu0 0.0
        %849 = vmatprep.subr.mxu0 0.0
        %850 = vmatpush1.xpose.msra.mxu0 0.0
        %851 = vmatprep.mubr.f32.mxu0 0.0
        %852 = vmatmul.mubr.f32.gmra.mrb[0].mxu0 %v783
        %v853 = vpop.f32.mrb[0].mxu0
        %v854 = vadd.f32 0.0, %v853
        %v855 = vpop.f32.mrb[0].mxu0
        %856 = vdwg.mxu0
        %v857 = vsel %vm617, %v854, -inf
        %858 = vmax.xlane.f32.xlu0 %v857
        %v859 = vpop.xlane.xlu0 %858
        %v860 = vsub.f32 %v854, %v859
        %v861 = vmul.f32 %v860, 1.442695
        %v862 = vpow.pop %v861
        %v863 = vsel %vm617, %v862, 0.0
        %864 = vadd.xlane.f32.xlu0 %v863
        %v865 = vpop.xlane.xlu0 %864
        %867 = vrot.lane.b32.xlu0 %v616, 120
        %v868 = vpop.permute.xlu0 %867
        %v871 = vsel %vm617, %v862, 0
        %873 = vmatprep.subr.mxu0 0.0
        %874 = vmatpush1.msra.mxu0 %v868
        %875 = vmatprep.subr.mxu0 0.0
        %876 = vmatpush1.msra.mxu0 0.0
        %877 = vmatprep.subr.mxu0 0.0
        %878 = vmatpush1.msra.mxu0 0.0
        %879 = vmatprep.subr.mxu0 0.0
        %880 = vmatpush1.msra.mxu0 0.0
        %881 = vmatprep.subr.mxu0 0.0
        %882 = vmatpush1.msra.mxu0 0.0
        %883 = vmatprep.subr.mxu0 0.0
        %884 = vmatpush1.msra.mxu0 0.0
        %885 = vmatprep.subr.mxu0 0.0
        %886 = vmatpush1.msra.mxu0 0.0
        %887 = vmatprep.subr.mxu0 0.0
        %888 = vmatpush1.msra.mxu0 0.0
        %889 = vmatprep.subr.mxu0 0.0
        %890 = vmatpush1.msra.mxu0 0.0
        %891 = vmatprep.subr.mxu0 0.0
        %892 = vmatpush1.msra.mxu0 0.0
        %893 = vmatprep.subr.mxu0 0.0
        %894 = vmatpush1.msra.mxu0 0.0
        %895 = vmatprep.subr.mxu0 0.0
        %896 = vmatpush1.msra.mxu0 0.0
        %897 = vmatprep.subr.mxu0 0.0
        %898 = vmatpush1.msra.mxu0 0.0
        %899 = vmatprep.subr.mxu0 0.0
        %900 = vmatpush1.msra.mxu0 0.0
        %901 = vmatprep.subr.mxu0 0.0
        %902 = vmatpush1.msra.mxu0 0.0
        %903 = vmatprep.subr.mxu0 0.0
        %904 = vmatpush1.msra.mxu0 0.0
        %905 = vmatprep.subr.mxu0 0.0
        %906 = vmatpush1.msra.mxu0 0.0
        %907 = vmatprep.subr.mxu0 0.0
        %908 = vmatpush1.msra.mxu0 0.0
        %909 = vmatprep.subr.mxu0 0.0
        %910 = vmatpush1.msra.mxu0 0.0
        %911 = vmatprep.subr.mxu0 0.0
        %912 = vmatpush1.msra.mxu0 0.0
        %913 = vmatprep.subr.mxu0 0.0
        %914 = vmatpush1.msra.mxu0 0.0
        %915 = vmatprep.subr.mxu0 0.0
        %916 = vmatpush1.msra.mxu0 0.0
        %917 = vmatprep.subr.mxu0 0.0
        %918 = vmatpush1.msra.mxu0 0.0
        %919 = vmatprep.subr.mxu0 0.0
        %920 = vmatpush1.msra.mxu0 0.0
        %921 = vmatprep.subr.mxu0 0.0
        %922 = vmatpush1.msra.mxu0 0.0
        %923 = vmatprep.subr.mxu0 0.0
        %924 = vmatpush1.msra.mxu0 0.0
        %925 = vmatprep.subr.mxu0 0.0
        %926 = vmatpush1.msra.mxu0 0.0
        %927 = vmatprep.subr.mxu0 0.0
        %928 = vmatpush1.msra.mxu0 0.0
        %929 = vmatprep.subr.mxu0 0.0
        %930 = vmatpush1.msra.mxu0 0.0
        %931 = vmatprep.subr.mxu0 0.0
        %932 = vmatpush1.msra.mxu0 0.0
        %933 = vmatprep.subr.mxu0 0.0
        %934 = vmatpush1.msra.mxu0 0.0
        %935 = vmatprep.subr.mxu0 0.0
        %936 = vmatpush1.msra.mxu0 0.0
        %937 = vmatprep.mubr.f32.mxu0 0.0
        %938 = vmatmul.mubr.f32.gmra.mrb[0].mxu0 %v871
        %v939 = vpop.f32.mrb[0].mxu0
        %v940 = vadd.f32 0.0, %v939
        %v941 = vpop.f32.mrb[0].mxu0
        %942 = vdwg.mxu0
        %v943 = vrcp.pop %v865
        %v944 = vmul.f32 %v940, %v943
        %946 = vrot.lane.b32.xlu0 %v944, 8
        %v947 = vpop.permute.xlu0 %946
        %vm949 = vcmask 130112
        %950 = vst.msk [vmem:[#allocation6] sm:$0xff] %vm949, %v947
        %951 = vrot.lane.b32.xlu0 %v612, 112
        %v952 = vpop.permute.xlu0 %951
        %953 = vrot.lane.b32.xlu0 %v615, 112
        %v954 = vpop.permute.xlu0 %953
        %v955 = vsel %vm617, %v952, 0
        %v957 = vsel %vm617, %v954, 0
        %959 = vmatprep.subr.mxu0 0.0
        %960 = vmatpush1.xpose.msra.mxu0 %v957
        %961 = vmatprep.subr.mxu0 0.0
        %962 = vmatpush1.xpose.msra.mxu0 0.0
        %963 = vmatprep.subr.mxu0 0.0
        %964 = vmatpush1.xpose.msra.mxu0 0.0
        %965 = vmatprep.subr.mxu0 0.0
        %966 = vmatpush1.xpose.msra.mxu0 0.0
        %967 = vmatprep.subr.mxu0 0.0
        %968 = vmatpush1.xpose.msra.mxu0 0.0
        %969 = vmatprep.subr.mxu0 0.0
        %970 = vmatpush1.xpose.msra.mxu0 0.0
        %971 = vmatprep.subr.mxu0 0.0
        %972 = vmatpush1.xpose.msra.mxu0 0.0
        %973 = vmatprep.subr.mxu0 0.0
        %974 = vmatpush1.xpose.msra.mxu0 0.0
        %975 = vmatprep.subr.mxu0 0.0
        %976 = vmatpush1.xpose.msra.mxu0 0.0
        %977 = vmatprep.subr.mxu0 0.0
        %978 = vmatpush1.xpose.msra.mxu0 0.0
        %979 = vmatprep.subr.mxu0 0.0
        %980 = vmatpush1.xpose.msra.mxu0 0.0
        %981 = vmatprep.subr.mxu0 0.0
        %982 = vmatpush1.xpose.msra.mxu0 0.0
        %983 = vmatprep.subr.mxu0 0.0
        %984 = vmatpush1.xpose.msra.mxu0 0.0
        %985 = vmatprep.subr.mxu0 0.0
        %986 = vmatpush1.xpose.msra.mxu0 0.0
        %987 = vmatprep.subr.mxu0 0.0
        %988 = vmatpush1.xpose.msra.mxu0 0.0
        %989 = vmatprep.subr.mxu0 0.0
        %990 = vmatpush1.xpose.msra.mxu0 0.0
        %991 = vmatprep.subr.mxu0 0.0
        %992 = vmatpush1.xpose.msra.mxu0 0.0
        %993 = vmatprep.subr.mxu0 0.0
        %994 = vmatpush1.xpose.msra.mxu0 0.0
        %995 = vmatprep.subr.mxu0 0.0
        %996 = vmatpush1.xpose.msra.mxu0 0.0
        %997 = vmatprep.subr.mxu0 0.0
        %998 = vmatpush1.xpose.msra.mxu0 0.0
        %999 = vmatprep.subr.mxu0 0.0
        %1000 = vmatpush1.xpose.msra.mxu0 0.0
        %1001 = vmatprep.subr.mxu0 0.0
        %1002 = vmatpush1.xpose.msra.mxu0 0.0
        %1003 = vmatprep.subr.mxu0 0.0
        %1004 = vmatpush1.xpose.msra.mxu0 0.0
        %1005 = vmatprep.subr.mxu0 0.0
        %1006 = vmatpush1.xpose.msra.mxu0 0.0
        %1007 = vmatprep.subr.mxu0 0.0
        %1008 = vmatpush1.xpose.msra.mxu0 0.0
        %1009 = vmatprep.subr.mxu0 0.0
        %1010 = vmatpush1.xpose.msra.mxu0 0.0
        %1011 = vmatprep.subr.mxu0 0.0
        %1012 = vmatpush1.xpose.msra.mxu0 0.0
        %1013 = vmatprep.subr.mxu0 0.0
        %1014 = vmatpush1.xpose.msra.mxu0 0.0
        %1015 = vmatprep.subr.mxu0 0.0
        %1016 = vmatpush1.xpose.msra.mxu0 0.0
        %1017 = vmatprep.subr.mxu0 0.0
        %1018 = vmatpush1.xpose.msra.mxu0 0.0
        %1019 = vmatprep.subr.mxu0 0.0
        %1020 = vmatpush1.xpose.msra.mxu0 0.0
        %1021 = vmatprep.subr.mxu0 0.0
        %1022 = vmatpush1.xpose.msra.mxu0 0.0
        %1023 = vmatprep.mubr.f32.mxu0 0.0
        %1024 = vmatmul.mubr.f32.gmra.mrb[0].mxu0 %v955
        %v1025 = vpop.f32.mrb[0].mxu0
        %v1026 = vadd.f32 0.0, %v1025
        %v1027 = vpop.f32.mrb[0].mxu0
        %1028 = vdwg.mxu0
        %v1029 = vsel %vm617, %v1026, -inf
        %1030 = vmax.xlane.f32.xlu0 %v1029
        %v1031 = vpop.xlane.xlu0 %1030
        %v1032 = vsub.f32 %v1026, %v1031
        %v1033 = vmul.f32 %v1032, 1.442695
        %v1034 = vpow.pop %v1033
        %v1035 = vsel %vm617, %v1034, 0.0
        %1036 = vadd.xlane.f32.xlu0 %v1035
        %v1037 = vpop.xlane.xlu0 %1036
        %1038 = vrot.lane.b32.xlu0 %v616, 112
        %v1039 = vpop.permute.xlu0 %1038
        %v1042 = vsel %vm617, %v1034, 0
        %1044 = vmatprep.subr.mxu0 0.0
        %1045 = vmatpush1.msra.mxu0 %v1039
        %1046 = vmatprep.subr.mxu0 0.0
        %1047 = vmatpush1.msra.mxu0 0.0
        %1048 = vmatprep.subr.mxu0 0.0
        %1049 = vmatpush1.msra.mxu0 0.0
        %1050 = vmatprep.subr.mxu0 0.0
        %1051 = vmatpush1.msra.mxu0 0.0
        %1052 = vmatprep.subr.mxu0 0.0
        %1053 = vmatpush1.msra.mxu0 0.0
        %1054 = vmatprep.subr.mxu0 0.0
        %1055 = vmatpush1.msra.mxu0 0.0
        %1056 = vmatprep.subr.mxu0 0.0
        %1057 = vmatpush1.msra.mxu0 0.0
        %1058 = vmatprep.subr.mxu0 0.0
        %1059 = vmatpush1.msra.mxu0 0.0
        %1060 = vmatprep.subr.mxu0 0.0
        %1061 = vmatpush1.msra.mxu0 0.0
        %1062 = vmatprep.subr.mxu0 0.0
        %1063 = vmatpush1.msra.mxu0 0.0
        %1064 = vmatprep.subr.mxu0 0.0
        %1065 = vmatpush1.msra.mxu0 0.0
        %1066 = vmatprep.subr.mxu0 0.0
        %1067 = vmatpush1.msra.mxu0 0.0
        %1068 = vmatprep.subr.mxu0 0.0
        %1069 = vmatpush1.msra.mxu0 0.0
        %1070 = vmatprep.subr.mxu0 0.0
        %1071 = vmatpush1.msra.mxu0 0.0
        %1072 = vmatprep.subr.mxu0 0.0
        %1073 = vmatpush1.msra.mxu0 0.0
        %1074 = vmatprep.subr.mxu0 0.0
        %1075 = vmatpush1.msra.mxu0 0.0
        %1076 = vmatprep.subr.mxu0 0.0
        %1077 = vmatpush1.msra.mxu0 0.0
        %1078 = vmatprep.subr.mxu0 0.0
        %1079 = vmatpush1.msra.mxu0 0.0
        %1080 = vmatprep.subr.mxu0 0.0
        %1081 = vmatpush1.msra.mxu0 0.0
        %1082 = vmatprep.subr.mxu0 0.0
        %1083 = vmatpush1.msra.mxu0 0.0
        %1084 = vmatprep.subr.mxu0 0.0
        %1085 = vmatpush1.msra.mxu0 0.0
        %1086 = vmatprep.subr.mxu0 0.0
        %1087 = vmatpush1.msra.mxu0 0.0
        %1088 = vmatprep.subr.mxu0 0.0
        %1089 = vmatpush1.msra.mxu0 0.0
        %1090 = vmatprep.subr.mxu0 0.0
        %1091 = vmatpush1.msra.mxu0 0.0
        %1092 = vmatprep.subr.mxu0 0.0
        %1093 = vmatpush1.msra.mxu0 0.0
        %1094 = vmatprep.subr.mxu0 0.0
        %1095 = vmatpush1.msra.mxu0 0.0
        %1096 = vmatprep.subr.mxu0 0.0
        %1097 = vmatpush1.msra.mxu0 0.0
        %1098 = vmatprep.subr.mxu0 0.0
        %1099 = vmatpush1.msra.mxu0 0.0
        %1100 = vmatprep.subr.mxu0 0.0
        %1101 = vmatpush1.msra.mxu0 0.0
        %1102 = vmatprep.subr.mxu0 0.0
        %1103 = vmatpush1.msra.mxu0 0.0
        %1104 = vmatprep.subr.mxu0 0.0
        %1105 = vmatpush1.msra.mxu0 0.0
        %1106 = vmatprep.subr.mxu0 0.0
        %1107 = vmatpush1.msra.mxu0 0.0
        %1108 = vmatprep.mubr.f32.mxu0 0.0
        %1109 = vmatmul.mubr.f32.gmra.mrb[0].mxu0 %v1042
        %v1110 = vpop.f32.mrb[0].mxu0
        %v1111 = vadd.f32 0.0, %v1110
        %v1112 = vpop.f32.mrb[0].mxu0
        %1113 = vdwg.mxu0
        %v1114 = vrcp.pop %v1037
        %v1115 = vmul.f32 %v1111, %v1114
        %1117 = vrot.lane.b32.xlu0 %v1115, 16
        %v1118 = vpop.permute.xlu0 %1117
        %vm1120 = vcmask 195712
        %1121 = vst.msk [vmem:[#allocation6] sm:$0xff] %vm1120, %v1118
        %1122 = vrot.lane.b32.xlu0 %v612, 104
        %v1123 = vpop.permute.xlu0 %1122
        %1124 = vrot.lane.b32.xlu0 %v615, 104
        %v1125 = vpop.permute.xlu0 %1124
        %v1126 = vsel %vm617, %v1123, 0
        %v1128 = vsel %vm617, %v1125, 0
        %1130 = vmatprep.subr.mxu0 0.0
        %1131 = vmatpush1.xpose.msra.mxu0 %v1128
        %1132 = vmatprep.subr.mxu0 0.0
        %1133 = vmatpush1.xpose.msra.mxu0 0.0
        %1134 = vmatprep.subr.mxu0 0.0
        %1135 = vmatpush1.xpose.msra.mxu0 0.0
        %1136 = vmatprep.subr.mxu0 0.0
        %1137 = vmatpush1.xpose.msra.mxu0 0.0
        %1138 = vmatprep.subr.mxu0 0.0
        %1139 = vmatpush1.xpose.msra.mxu0 0.0
        %1140 = vmatprep.subr.mxu0 0.0
        %1141 = vmatpush1.xpose.msra.mxu0 0.0
        %1142 = vmatprep.subr.mxu0 0.0
        %1143 = vmatpush1.xpose.msra.mxu0 0.0
        %1144 = vmatprep.subr.mxu0 0.0
        %1145 = vmatpush1.xpose.msra.mxu0 0.0
        %1146 = vmatprep.subr.mxu0 0.0
        %1147 = vmatpush1.xpose.msra.mxu0 0.0
        %1148 = vmatprep.subr.mxu0 0.0
        %1149 = vmatpush1.xpose.msra.mxu0 0.0
        %1150 = vmatprep.subr.mxu0 0.0
        %1151 = vmatpush1.xpose.msra.mxu0 0.0
        %1152 = vmatprep.subr.mxu0 0.0
        %1153 = vmatpush1.xpose.msra.mxu0 0.0
        %1154 = vmatprep.subr.mxu0 0.0
        %1155 = vmatpush1.xpose.msra.mxu0 0.0
        %1156 = vmatprep.subr.mxu0 0.0
        %1157 = vmatpush1.xpose.msra.mxu0 0.0
        %1158 = vmatprep.subr.mxu0 0.0
        %1159 = vmatpush1.xpose.msra.mxu0 0.0
        %1160 = vmatprep.subr.mxu0 0.0
        %1161 = vmatpush1.xpose.msra.mxu0 0.0
        %1162 = vmatprep.subr.mxu0 0.0
        %1163 = vmatpush1.xpose.msra.mxu0 0.0
        %1164 = vmatprep.subr.mxu0 0.0
        %1165 = vmatpush1.xpose.msra.mxu0 0.0
        %1166 = vmatprep.subr.mxu0 0.0
        %1167 = vmatpush1.xpose.msra.mxu0 0.0
        %1168 = vmatprep.subr.mxu0 0.0
        %1169 = vmatpush1.xpose.msra.mxu0 0.0
        %1170 = vmatprep.subr.mxu0 0.0
        %1171 = vmatpush1.xpose.msra.mxu0 0.0
        %1172 = vmatprep.subr.mxu0 0.0
        %1173 = vmatpush1.xpose.msra.mxu0 0.0
        %1174 = vmatprep.subr.mxu0 0.0
        %1175 = vmatpush1.xpose.msra.mxu0 0.0
        %1176 = vmatprep.subr.mxu0 0.0
        %1177 = vmatpush1.xpose.msra.mxu0 0.0
        %1178 = vmatprep.subr.mxu0 0.0
        %1179 = vmatpush1.xpose.msra.mxu0 0.0
        %1180 = vmatprep.subr.mxu0 0.0
        %1181 = vmatpush1.xpose.msra.mxu0 0.0
        %1182 = vmatprep.subr.mxu0 0.0
        %1183 = vmatpush1.xpose.msra.mxu0 0.0
        %1184 = vmatprep.subr.mxu0 0.0
        %1185 = vmatpush1.xpose.msra.mxu0 0.0
        %1186 = vmatprep.subr.mxu0 0.0
        %1187 = vmatpush1.xpose.msra.mxu0 0.0
        %1188 = vmatprep.subr.mxu0 0.0
        %1189 = vmatpush1.xpose.msra.mxu0 0.0
        %1190 = vmatprep.subr.mxu0 0.0
        %1191 = vmatpush1.xpose.msra.mxu0 0.0
        %1192 = vmatprep.subr.mxu0 0.0
        %1193 = vmatpush1.xpose.msra.mxu0 0.0
        %1194 = vmatprep.mubr.f32.mxu0 0.0
        %1195 = vmatmul.mubr.f32.gmra.mrb[0].mxu0 %v1126
        %v1196 = vpop.f32.mrb[0].mxu0
        %v1197 = vadd.f32 0.0, %v1196
        %v1198 = vpop.f32.mrb[0].mxu0
        %1199 = vdwg.mxu0
        %v1200 = vsel %vm617, %v1197, -inf
        %1201 = vmax.xlane.f32.xlu0 %v1200
        %v1202 = vpop.xlane.xlu0 %1201
        %v1203 = vsub.f32 %v1197, %v1202
        %v1204 = vmul.f32 %v1203, 1.442695
        %v1205 = vpow.pop %v1204
        %v1206 = vsel %vm617, %v1205, 0.0
        %1207 = vadd.xlane.f32.xlu0 %v1206
        %v1208 = vpop.xlane.xlu0 %1207
        %1209 = vrot.lane.b32.xlu0 %v616, 104
        %v1210 = vpop.permute.xlu0 %1209
        %v1213 = vsel %vm617, %v1205, 0
        %1215 = vmatprep.subr.mxu0 0.0
        %1216 = vmatpush1.msra.mxu0 %v1210
        %1217 = vmatprep.subr.mxu0 0.0
        %1218 = vmatpush1.msra.mxu0 0.0
        %1219 = vmatprep.subr.mxu0 0.0
        %1220 = vmatpush1.msra.mxu0 0.0
        %1221 = vmatprep.subr.mxu0 0.0
        %1222 = vmatpush1.msra.mxu0 0.0
        %1223 = vmatprep.subr.mxu0 0.0
        %1224 = vmatpush1.msra.mxu0 0.0
        %1225 = vmatprep.subr.mxu0 0.0
        %1226 = vmatpush1.msra.mxu0 0.0
        %1227 = vmatprep.subr.mxu0 0.0
        %1228 = vmatpush1.msra.mxu0 0.0
        %1229 = vmatprep.subr.mxu0 0.0
        %1230 = vmatpush1.msra.mxu0 0.0
        %1231 = vmatprep.subr.mxu0 0.0
        %1232 = vmatpush1.msra.mxu0 0.0
        %1233 = vmatprep.subr.mxu0 0.0
        %1234 = vmatpush1.msra.mxu0 0.0
        %1235 = vmatprep.subr.mxu0 0.0
        %1236 = vmatpush1.msra.mxu0 0.0
        %1237 = vmatprep.subr.mxu0 0.0
        %1238 = vmatpush1.msra.mxu0 0.0
        %1239 = vmatprep.subr.mxu0 0.0
        %1240 = vmatpush1.msra.mxu0 0.0
        %1241 = vmatprep.subr.mxu0 0.0
        %1242 = vmatpush1.msra.mxu0 0.0
        %1243 = vmatprep.subr.mxu0 0.0
        %1244 = vmatpush1.msra.mxu0 0.0
        %1245 = vmatprep.subr.mxu0 0.0
        %1246 = vmatpush1.msra.mxu0 0.0
        %1247 = vmatprep.subr.mxu0 0.0
        %1248 = vmatpush1.msra.mxu0 0.0
        %1249 = vmatprep.subr.mxu0 0.0
        %1250 = vmatpush1.msra.mxu0 0.0
        %1251 = vmatprep.subr.mxu0 0.0
        %1252 = vmatpush1.msra.mxu0 0.0
        %1253 = vmatprep.subr.mxu0 0.0
        %1254 = vmatpush1.msra.mxu0 0.0
        %1255 = vmatprep.subr.mxu0 0.0
        %1256 = vmatpush1.msra.mxu0 0.0
        %1257 = vmatprep.subr.mxu0 0.0
        %1258 = vmatpush1.msra.mxu0 0.0
        %1259 = vmatprep.subr.mxu0 0.0
        %1260 = vmatpush1.msra.mxu0 0.0
        %1261 = vmatprep.subr.mxu0 0.0
        %1262 = vmatpush1.msra.mxu0 0.0
        %1263 = vmatprep.subr.mxu0 0.0
        %1264 = vmatpush1.msra.mxu0 0.0
        %1265 = vmatprep.subr.mxu0 0.0
        %1266 = vmatpush1.msra.mxu0 0.0
        %1267 = vmatprep.subr.mxu0 0.0
        %1268 = vmatpush1.msra.mxu0 0.0
        %1269 = vmatprep.subr.mxu0 0.0
        %1270 = vmatpush1.msra.mxu0 0.0
        %1271 = vmatprep.subr.mxu0 0.0
        %1272 = vmatpush1.msra.mxu0 0.0
        %1273 = vmatprep.subr.mxu0 0.0
        %1274 = vmatpush1.msra.mxu0 0.0
        %1275 = vmatprep.subr.mxu0 0.0
        %1276 = vmatpush1.msra.mxu0 0.0
        %1277 = vmatprep.subr.mxu0 0.0
        %1278 = vmatpush1.msra.mxu0 0.0
        %1279 = vmatprep.mubr.f32.mxu0 0.0
        %1280 = vmatmul.mubr.f32.gmra.mrb[0].mxu0 %v1213
        %v1281 = vpop.f32.mrb[0].mxu0
        %v1282 = vadd.f32 0.0, %v1281
        %v1283 = vpop.f32.mrb[0].mxu0
        %1284 = vdwg.mxu0
        %v1285 = vrcp.pop %v1208
        %v1286 = vmul.f32 %v1282, %v1285
        %1288 = vrot.lane.b32.xlu0 %v1286, 24
        %v1289 = vpop.permute.xlu0 %1288
        %vm1291 = vcmask 261312
        %1292 = vst.msk [vmem:[#allocation6] sm:$0xff] %vm1291, %v1289
        %v1293 = vld [vmem:[#allocation6] sm:$0xff]
        %s1294 = scalar_lea.vmem [#allocation15], %s535
        %v1295 = vld [vmem:[%s1294] sm:$0xff]
        %v1296 = vld [vmem:[%s1294 + $0x8] sm:$0xff]
        %v1297 = vld [vmem:[%s1294 + $0x10] sm:$0xff]
        %v1298 = vld [vmem:[%s1294 + $0x18] sm:$0xff]
        %v1300 = vsel %vm541, %v1293, 0
        %1302 = vmatprep.subr.mxu0 0.0
        %1303 = vmatpush1.msra.mxu0 %v1295
        %1304 = vmatprep.subr.mxu0 0.0
        %1305 = vmatpush1.msra.mxu0 %v1296
        %1306 = vmatprep.subr.mxu0 0.0
        %1307 = vmatpush1.msra.mxu0 %v1297
        %1308 = vmatprep.subr.mxu0 0.0
        %1309 = vmatpush1.msra.mxu0 %v1298
        %1310 = vmatprep.subr.mxu0 0.0
        %1311 = vmatpush1.msra.mxu0 0.0
        %1312 = vmatprep.subr.mxu0 0.0
        %1313 = vmatpush1.msra.mxu0 0.0
        %1314 = vmatprep.subr.mxu0 0.0
        %1315 = vmatpush1.msra.mxu0 0.0
        %1316 = vmatprep.subr.mxu0 0.0
        %1317 = vmatpush1.msra.mxu0 0.0
        %1318 = vmatprep.subr.mxu0 0.0
        %1319 = vmatpush1.msra.mxu0 0.0
        %1320 = vmatprep.subr.mxu0 0.0
        %1321 = vmatpush1.msra.mxu0 0.0
        %1322 = vmatprep.subr.mxu0 0.0
        %1323 = vmatpush1.msra.mxu0 0.0
        %1324 = vmatprep.subr.mxu0 0.0
        %1325 = vmatpush1.msra.mxu0 0.0
        %1326 = vmatprep.subr.mxu0 0.0
        %1327 = vmatpush1.msra.mxu0 0.0
        %1328 = vmatprep.subr.mxu0 0.0
        %1329 = vmatpush1.msra.mxu0 0.0
        %1330 = vmatprep.subr.mxu0 0.0
        %1331 = vmatpush1.msra.mxu0 0.0
        %1332 = vmatprep.subr.mxu0 0.0
        %1333 = vmatpush1.msra.mxu0 0.0
        %1334 = vmatprep.subr.mxu0 0.0
        %1335 = vmatpush1.msra.mxu0 0.0
        %1336 = vmatprep.subr.mxu0 0.0
        %1337 = vmatpush1.msra.mxu0 0.0
        %1338 = vmatprep.subr.mxu0 0.0
        %1339 = vmatpush1.msra.mxu0 0.0
        %1340 = vmatprep.subr.mxu0 0.0
        %1341 = vmatpush1.msra.mxu0 0.0
        %1342 = vmatprep.subr.mxu0 0.0
        %1343 = vmatpush1.msra.mxu0 0.0
        %1344 = vmatprep.subr.mxu0 0.0
        %1345 = vmatpush1.msra.mxu0 0.0
        %1346 = vmatprep.subr.mxu0 0.0
        %1347 = vmatpush1.msra.mxu0 0.0
        %1348 = vmatprep.subr.mxu0 0.0
        %1349 = vmatpush1.msra.mxu0 0.0
        %1350 = vmatprep.subr.mxu0 0.0
        %1351 = vmatpush1.msra.mxu0 0.0
        %1352 = vmatprep.subr.mxu0 0.0
        %1353 = vmatpush1.msra.mxu0 0.0
        %1354 = vmatprep.subr.mxu0 0.0
        %1355 = vmatpush1.msra.mxu0 0.0
        %1356 = vmatprep.subr.mxu0 0.0
        %1357 = vmatpush1.msra.mxu0 0.0
        %1358 = vmatprep.subr.mxu0 0.0
        %1359 = vmatpush1.msra.mxu0 0.0
        %1360 = vmatprep.subr.mxu0 0.0
        %1361 = vmatpush1.msra.mxu0 0.0
        %1362 = vmatprep.subr.mxu0 0.0
        %1363 = vmatpush1.msra.mxu0 0.0
        %1364 = vmatprep.subr.mxu0 0.0
        %1365 = vmatpush1.msra.mxu0 0.0
        %1366 = vmatprep.mubr.f32.mxu0 0.0
        %1367 = vmatmul.mubr.f32.gmra.mrb[0].mxu0 %v1300
        %v1368 = vpop.f32.mrb[0].mxu0
        %v1369 = vadd.f32 0.0, %v1368
        %v1370 = vpop.f32.mrb[0].mxu0
        %1371 = vdwg.mxu0
        %s1372 = scalar_lea.vmem [#allocation3], %s532
        %v1373 = vld [vmem:[%s1372] sm:$0xff]
        %v1374 = vadd.f32 %v1373, %v1369
        %1375 = vst.msk [vmem:[%s1372] sm:$0xff] %vm541, %v1374
        // Predicated region
        $region73: #{tpu_custom_call.1} parent=43 // pred_check
          _
        $region74: #{tpu_custom_call.1} parent=43 // pred_check_branch
          %1377 = sbr.rel (%p346) target = $region76
        $region75: #{tpu_custom_call.1} parent=43 // pred_region
          %v1378 = vld [vmem:[#allocation3] sm:$0xff]
          %1379 = vst.msk [vmem:[%s343] sm:$0xff] %vm541, %v1378
        $region76: #{tpu_custom_call.1} parent=43 // pred_fallthru
          _
        %s1380 = sand.u32 %s183, 1
        %s1381 = scalar_lea.sflag [#allocation9], %s1380
        %s1382 = sand.u32 %s183, 1
        %s1383 = smul.addr %s1382, 8
        %s1384 = scalar_lea.vmem [#allocation16], %s1383
        // Predicated region
        $region77: #{tpu_custom_call.1} parent=43 // pred_check
          %p1385 = pneg %p193
        $region78: #{tpu_custom_call.1} parent=43 // pred_check_branch
          %1387 = sbr.rel (%p1385) target = $region80
        $region79: #{tpu_custom_call.1} parent=43 // pred_region
          %s1389 = ssub.s32 128, 128
          %1390 = vsyncadd %s1381, %s1389
          %s1391 = smul.addr %s30, 128
          %s1392 = scalar_lea.hbm %s6, %s1391
          %s1394 = sshll.u32 %s1384, 4
          %s1395 = int_to_ptr.vmem [resolvable:$true] %s1394
          %1397 = dma.vmem_to_hbm [thread:$0]  %s1395, 128, %s1392, %s1381
        $region80: #{tpu_custom_call.1} parent=43 // pred_fallthru
          _
      $region44: #{tpu_custom_call.1} parent=5 // pred_fallthru
        _
      %p1398 = scmp.le.s32.totalorder 2, %s20
      // Predicated region
      $region81: #{tpu_custom_call.1} parent=5 // pred_check
        %p1399 = pneg %p1398
      $region82: #{tpu_custom_call.1} parent=5 // pred_check_branch
        %1401 = sbr.rel (%p1399) target = $region84
      $region83: #{tpu_custom_call.1} parent=5 // pred_region
        %s1402 = ssub.s32 %s20, 2
        // Predicated region
        $region85: #{tpu_custom_call.1} parent=83 // pred_check
          %p1403 = pneg %p199
        $region86: #{tpu_custom_call.1} parent=83 // pred_check_branch
          %1405 = sbr.rel (%p1403) target = $region88
        $region87: #{tpu_custom_call.1} parent=83 // pred_region
          %s1406 = sand.u32 %s184, 1
          %s1407 = scalar_lea.sflag [#allocation9], %s1406
          %s1408 = sand.u32 %s184, 1
          %s1409 = smul.addr %s1408, 8
          %s1410 = scalar_lea.vmem [#allocation16], %s1409
          %1411 = dma.done %s1407, 128
        $region88: #{tpu_custom_call.1} parent=83 // pred_fallthru
          _
      $region84: #{tpu_custom_call.1} parent=5 // pred_fallthru
        _
    $region6: #{tpu_custom_call.1} parent=1 // loop_footer
      %s24 = sadd.s32 1, %s20
    $region7: #{tpu_custom_call.1} parent=1 // loop_footer_branch
      %19 = sbr.rel target = $region3
    $region8: #{tpu_custom_call.1} parent=1 // loop_exit
      _
    %1412 = vsyncpa [#allocation8], 1
    %s1413 = scalar_lea.sflag [#allocation8], 1
    %1414 = vsyncpa %s1413, 1
    %1415 = vsyncpa [#allocation11], 1
    %1416 = vsyncpa [#allocation14], 1
    %1417 = vsyncpa [#allocation9], 1
    %s1418 = scalar_lea.sflag [#allocation9], 1
    %1419 = vsyncpa %s1418, 1

</llo_original>
